<compile_context>
chip_gen: v7x
topology: tpu7x:2x2x1
jax: 0.10.0
libtpu: 0.0.40
codegen_flags: <defaults>
</compile_context>

<pallas_src>
import functools

import jax
import jax.numpy as jnp
from jax.experimental import pallas as pl
from jax.experimental.pallas import tpu as pltpu

EPS = 1e-8


# ----------------------------------------------------------------------------
# Chip-aware VMEM budgets (per-TensorCore on v7x, whole VMEM on v5e/v6e).
# ----------------------------------------------------------------------------
def _vmem_capacity_bytes():
    try:
        cap = int(pltpu.get_tpu_info().vmem_capacity_bytes)
        return min(max(cap, 16 * 1024 * 1024), 256 * 1024 * 1024)
    except Exception:
        return 64 * 1024 * 1024          # conservative (v7x per-TC) fallback


_VMEM_CAP = _vmem_capacity_bytes()
_TILE_VMEM_BUDGET = (_VMEM_CAP * 3) // 8        # ~24 MiB on v7x, ~48 MiB on v5e/v6e
_VMEM_LIMIT_BYTES = (_VMEM_CAP * 11) // 20      # ~35 MiB on v7x, ~70 MiB on v5e/v6e


def _round_up(x, m):
    return ((x + m - 1) // m) * m


def _pick_tile_i(N, Sx, V3):
    """Largest query-row tile whose double-buffered bf16 edge blocks + f32
    upcasts/raw products + resident K/V fit the chip-aware VMEM budget.
    Accounts for lane padding of the key axis (128) and sublane padding (8)."""
    n_lane = _round_up(N, 128)
    feat = _round_up(Sx, 8) + _round_up(V3, 8)
    # Per query row: 2x-buffered bf16 edge block + f32 upcast + f32 raw product.
    per_row = n_lane * feat * (2 * 2 + 4 + 4)
    # Resident per grid cell: ks_t/kv_t f32 (2x-buffered) + vs/vv bf16 blocks
    # (feat padded to 128 lanes, 2x-buffered) + logits/probs/out + scratch headroom.
    fixed = (2 * n_lane * feat * 4
             + 2 * 2 * (N * 128 * 2)
             + 4 * 1024 * 1024)
    avail = _TILE_VMEM_BUDGET - fixed
    if N <= 8 or avail >= N * per_row:
        return N
    t = max(avail // per_row, 8)
    # TODO(synk): for very large N add a key-tile grid axis with online softmax
    # instead of shrinking the query tile further.
    return int(min((t // 8) * 8, N))


# ----------------------------------------------------------------------------
# Pallas kernel 1: geometric-vector attention (scalar + vector paths, j on lanes)
# ----------------------------------------------------------------------------
def _attn_kernel(qs_ref, qv_ref, ks_ref, kv_ref, es_ref, ev_ref,
                 vs_ref, vv_ref, m_ref, out_ref, *, n_head, ds, dv):
    f32 = jnp.float32
    dv3 = dv * 3
    sx = n_head * ds
    inv_s = 1.0 / float(ds) ** 0.5
    inv_v = 1.0 / float(dv3) ** 0.5
    neg_big = -jnp.finfo(f32).max

    qs = qs_ref[0]                         # [TI, Sx]      f32
    qv = qv_ref[0]                         # [TI, V3]      f32
    ks = ks_ref[0]                         # [Sx, N]       f32   (j on lanes)
    kv = kv_ref[0]                         # [V3, N]       f32   (j on lanes)
    es = es_ref[0].astype(f32)             # [TI, Sx, N]   bf16 in HBM
    ev = ev_ref[0].astype(f32)             # [TI, V3, N]   bf16 in HBM

    # TODO(synk): on v6e/v7x these triple products could stay in bf16 (native
    # bf16 VALU, 2x vreg density) with f32 head-sum accumulation; kept f32 for
    # v5e portability.
    raw_s = qs[:, :, None] * ks[None, :, :] * es      # [TI, Sx, N]
    raw_v = qv[:, :, None] * kv[None, :, :] * ev      # [TI, V3, N]

    # Per-head logits: feature sums run across sublanes, key axis j stays on
    # lanes.  All 2*n_head softmaxes are batched into one mask/max/exp/sum.
    logits = []
    for h in range(n_head):
        logits.append(jnp.sum(raw_s[:, h * ds:(h + 1) * ds, :],
                              axis=1, keepdims=True) * inv_s)
    for h in range(n_head):
        logits.append(jnp.sum(raw_v[:, h * dv3:(h + 1) * dv3, :],
                              axis=1, keepdims=True) * inv_v)
    logits = jnp.concatenate(logits, axis=1)          # [TI, 2H, N]

    keep = (m_ref[0] > 0.5)[None]                     # [1, 1, N] key mask
    logits = jnp.where(keep, logits, neg_big)
    logits = logits - jnp.max(logits, axis=-1, keepdims=True)
    p = jnp.exp(logits)
    p = p * pl.reciprocal(jnp.sum(p, axis=-1, keepdims=True), approx=True)

    vs = vs_ref[0]                                    # [N, Sx] bf16
    vv = vv_ref[0]                                    # [N, V3] bf16
    pb = p.astype(vs.dtype)                           # bf16 MXU operands

    # Tiny per-head matmuls (MXU has slack); results land directly in the single
    # lane-dense [TI, Sx+V3] output slab -> no trailing concatenate.
    for h in range(n_head):
        out_ref[0, :, h * ds:(h + 1) * ds] = jnp.dot(
            pb[:, h, :], vs[:, h * ds:(h + 1) * ds], preferred_element_type=f32)
    for h in range(n_head):
        out_ref[0, :, sx + h * dv3:sx + (h + 1) * dv3] = jnp.dot(
            pb[:, n_head + h, :], vv[:, h * dv3:(h + 1) * dv3],
            preferred_element_type=f32)


def pallas_attention(qs, qv, ks_t, kv_t, es_t, ev_t, vs, vv, mask_f,
                     n_head, ds, dv, tile_i):
    B, N, Sx = qs.shape
    V3 = qv.shape[-1]
    D = Sx + V3
    n_it = pl.cdiv(N, tile_i)
    kern = functools.partial(_attn_kernel, n_head=n_head, ds=ds, dv=dv)

    q_spec = lambda d: pl.BlockSpec((1, tile_i, d), lambda b, it: (b, it, 0))
    kt_spec = lambda d: pl.BlockSpec((1, d, N), lambda b, it: (b, 0, 0))
    v_spec = lambda d: pl.BlockSpec((1, N, d), lambda b, it: (b, 0, 0))
    e_spec = lambda d: pl.BlockSpec((1, tile_i, d, N), lambda b, it: (b, it, 0, 0))
    m_spec = pl.BlockSpec((1, 1, N), lambda b, it: (b, 0, 0))

    return pl.pallas_call(
        kern,
        out_shape=jax.ShapeDtypeStruct((B, N, D), jnp.float32),
        grid=(B, n_it),
        in_specs=[q_spec(Sx), q_spec(V3), kt_spec(Sx), kt_spec(V3),
                  e_spec(Sx), e_spec(V3), v_spec(Sx), v_spec(V3), m_spec],
        out_specs=pl.BlockSpec((1, tile_i, D), lambda b, it: (b, it, 0)),
        compiler_params=pltpu.CompilerParams(
            dimension_semantics=("parallel", "parallel"),
            vmem_limit_bytes=_VMEM_LIMIT_BYTES),
    )(qs, qv, ks_t, kv_t, es_t, ev_t, vs, vv, mask_f)


# ----------------------------------------------------------------------------
# Pallas kernel 2: GVNorm (LayerNorm + VecLayerNorm) with fused affine epilogue
# ----------------------------------------------------------------------------
def _gvnorm_kernel(sca_ref, vec_ref, w_ref, b_ref, vg_ref, vb_ref,
                   osca_ref, ovec_ref, *, dv):
    sca = sca_ref[...]
    mean = jnp.mean(sca, axis=-1, keepdims=True)
    var = jnp.mean((sca - mean) ** 2, axis=-1, keepdims=True)
    osca_ref[...] = (sca - mean) * jax.lax.rsqrt(var + 1e-5) * w_ref[...] + b_ref[...]

    vec = vec_ref[...]                                  # [M, Dv*3]
    nzm = (vec != 0).astype(jnp.float32)
    ssq = jnp.sum(vec * vec, axis=-1, keepdims=True)    # sum over (Dv, 3)
    inv = jax.lax.rsqrt((ssq + EPS) / dv)
    ovec_ref[...] = (vec * inv * nzm) * vg_ref[...] + vb_ref[...]


def pallas_gvnorm(sca2d, vec2d, ln_w, ln_b, vg, vb, dv):
    M, S = sca2d.shape
    D3 = vec2d.shape[-1]
    tile_m = M if M <= 1024 else 1024
    kern = functools.partial(_gvnorm_kernel, dv=dv)
    row = lambda d: pl.BlockSpec((tile_m, d), lambda i: (i, 0))
    par = lambda d: pl.BlockSpec((1, d), lambda i: (0, 0))
    return pl.pallas_call(
        kern,
        out_shape=(jax.ShapeDtypeStruct((M, S), jnp.float32),
                   jax.ShapeDtypeStruct((M, D3), jnp.float32)),
        grid=(pl.cdiv(M, tile_m),),
        in_specs=[row(S), row(D3), par(S), par(S), par(D3), par(D3)],
        out_specs=(row(S), row(D3)),
        compiler_params=pltpu.CompilerParams(dimension_semantics=("parallel",)),
    )(sca2d, vec2d, ln_w, ln_b, vg, vb)


# ----------------------------------------------------------------------------
# JAX glue mirroring the PyTorch module structure (dropout == 0 everywhere).
# Tiny GEMMs stay in XLA (direct contraction; no W.T transpose op).
# ----------------------------------------------------------------------------
def linear(x, W, b=None):
    """PyTorch-style Linear, W: [out, in]."""
    y = jnp.einsum('...i,oi->...o', x, W)
    if b is not None:
        y = y + b
    return y


def vec_linear(vec, W):
    """VNL linear over the vector-channel dim: vec [..., Din, 3] -> [..., Dout, 3]."""
    return jnp.einsum('...ic,oi->...oc', vec, W)


def vnl_leaky(W, vec):
    vec_out = vec_linear(vec, W)
    vec_dot = jnp.sum(vec * vec_out, axis=-1, keepdims=True)
    m = (vec_dot >= 0).astype(vec.dtype)
    nsq = jnp.sum(vec_out * vec_out, axis=-1, keepdims=True)
    return 0.01 * vec + 0.99 * (m * vec + (1 - m) * (vec - vec_out * vec_dot / (nsq + EPS)))


def gvl(p, sca, vec):
    vec_1 = vec_linear(vec, p['W_v1'])
    vec_1_norm = jnp.sqrt(jnp.sum(vec_1 * vec_1, axis=-1))
    sca_cat = jnp.concatenate([vec_1_norm, sca], axis=-1)
    sca_out = linear(sca_cat, p['sca']['W'], p['sca']['b'])
    vec_2 = vec_linear(vec_1, p['W_v2'])
    g = jax.nn.sigmoid(linear(sca_out, p['gate']['W'], p['gate']['b']))[..., None]
    return sca_out, g * vec_2


def gvp(p, sca, vec):
    sca, vec = gvl(p['lin'], sca, vec)
    vec = vnl_leaky(p['act_vec_W'], vec)
    sca = jnp.where(sca >= 0, sca, 0.01 * sca)   # LeakyReLU(0.01)
    return sca, vec


def gv_ff(p, sca, vec):
    sca, vec = gvp(p['ff1'], sca, vec)
    sca, vec = gvl(p['ff2'], sca, vec)
    return sca, vec


def gv_gate_residue(p, sca, vec, res_sca, res_vec):
    g_sca, g_vec = gvl(
        p['gate'],
        jnp.concatenate([sca, res_sca, sca - res_sca], axis=-1),
        jnp.concatenate([vec, res_vec, vec - res_vec], axis=-2))
    g_sca = jax.nn.sigmoid(g_sca)
    g_vec = jax.nn.sigmoid(jnp.sqrt(jnp.sum(g_vec * g_vec, axis=-1, keepdims=True)))
    out_sca = sca * g_sca + res_sca * (1 - g_sca)
    out_vec = vec * g_vec + res_vec * (1 - g_vec)
    return out_sca, out_vec


def gvnorm(p, sca, vec):
    S = sca.shape[-1]
    Dv = vec.shape[-2]
    D3 = Dv * 3
    osca, ovec = pallas_gvnorm(
        sca.reshape(-1, S), vec.reshape(-1, D3),
        p['ln_w'].reshape(1, S), p['ln_b'].reshape(1, S),
        jnp.broadcast_to(p['gamma'], (1, D3)).astype(jnp.float32),
        jnp.broadcast_to(p['beta'], (1, D3)).astype(jnp.float32),
        Dv)
    return osca.reshape(sca.shape), ovec.reshape(vec.shape)


def gv_gate_norm_ff(p, sca, vec):
    res_s, res_v = sca, vec
    sca, vec = gv_ff(p['ff'], sca, vec)
    sca, vec = gv_gate_residue(p['gate'], sca, vec, res_s, res_v)
    return gvnorm(p['norm'], sca, vec)


def gv_message(p, x_sca, x_vec, edge_sca, edge_vec, mask, n_head):
    B, N, Sx = x_sca.shape
    Vx = x_vec.shape[-2]
    ds, dv = Sx // n_head, Vx // n_head
    V3 = Vx * 3

    qkv_s, qkv_v = gvl(p['qkv'], x_sca, x_vec)            # [B,N,3Sx], [B,N,3Vx,3]
    qs, ks, vs = jnp.split(qkv_s, 3, axis=-1)             # [B,N,Sx] each
    qv, kv, vv = jnp.split(qkv_v, 3, axis=-2)             # [B,N,Vx,3] each
    qv = qv.reshape(B, N, V3)                              # (channel,3) -> lanes
    kv = kv.reshape(B, N, V3)
    vv = vv.reshape(B, N, V3)

    # Key axis j goes on LANES inside the kernel.
    ks_t = jnp.swapaxes(ks, 1, 2)                          # [B, Sx, N]
    kv_t = jnp.swapaxes(kv, 1, 2)                          # [B, V3, N]

    es, ev = gvl(p['edge_k'], edge_sca, edge_vec)          # [B,N,N,Sx], [B,N,N,Vx,3]
    # TODO(synk): emit the edge projection directly in [B, i, feat, j] (or fuse the
    # edge GVL into the attention kernel) to drop this extra HBM transpose pass.
    es_t = jnp.swapaxes(es, 2, 3).astype(jnp.bfloat16)                     # [B,N,Sx,N]
    ev_t = jnp.swapaxes(ev.reshape(B, N, N, V3), 2, 3).astype(jnp.bfloat16)  # [B,N,V3,N]

    vs_b = vs.astype(jnp.bfloat16)                         # bf16 MXU value operands
    vv_b = vv.astype(jnp.bfloat16)
    mask_f = mask.astype(jnp.float32).reshape(B, 1, N)

    tile_i = _pick_tile_i(N, Sx, V3)
    out = pallas_attention(qs, qv, ks_t, kv_t, es_t, ev_t, vs_b, vv_b, mask_f,
                           n_head, ds, dv, tile_i)         # [B, N, Sx+V3]

    x_sca_out = out[..., :Sx]
    x_vec_out = out[..., Sx:].reshape(B, N, Vx, 3)

    # TODO(synk): attention-weight dropout skipped (dropout == 0 in this config).
    return gvp(p['x_out'], x_sca_out, x_vec_out)


def gate_norm_message(p, x_sca, x_vec, edge_sca, edge_vec, mask, n_head):
    res_s, res_v = x_sca, x_vec
    m_s, m_v = gv_message(p['msg'], x_sca, x_vec, edge_sca, edge_vec, mask, n_head)
    g_s, g_v = gv_gate_residue(p['node_gate'], m_s, m_v, res_s, res_v)
    n_s, n_v = gvnorm(p['node_norm'], g_s, g_v)
    return (n_s, n_v), (edge_sca, edge_vec)   # update_edge=False -> edges pass through


def gv_graph_transformer_block(params, x_sca, x_vec, edge_sca, edge_vec, mask, n_head):
    (x_s, x_v), (e_s, e_v) = gate_norm_message(
        params['message_update'], x_sca, x_vec, edge_sca, edge_vec, mask, n_head)
    x_s, x_v = gv_gate_norm_ff(params['node_ff'], x_s, x_v)
    return (x_s, x_v), (e_s, e_v)


# ----------------------------------------------------------------------------
# Deterministic parameter init (shapes follow the PyTorch __init__)
# ----------------------------------------------------------------------------
class KeyGen:
    def __init__(self, seed):
        self.key = jax.random.PRNGKey(seed)

    def __call__(self):
        self.key, sub = jax.random.split(self.key)
        return sub


def init_linear(kg, out_dim, in_dim, scale=0.1):
    return {'W': jax.random.normal(kg(), (out_dim, in_dim), jnp.float32) * scale,
            'b': jax.random.normal(kg(), (out_dim,), jnp.float32) * scale}


def init_gvl(kg, in_s, in_v, out_s, out_v, scale=0.1):
    hid = max(in_v, out_v)
    return {'W_v1': jax.random.normal(kg(), (hid, in_v), jnp.float32) * scale,
            'W_v2': jax.random.normal(kg(), (out_v, hid), jnp.float32) * scale,
            'gate': init_linear(kg, out_v, out_s),
            'sca': init_linear(kg, out_s, in_s + hid)}


def init_gvp(kg, in_s, in_v, out_s, out_v):
    return {'lin': init_gvl(kg, in_s, in_v, out_s, out_v),
            'act_vec_W': jax.random.normal(kg(), (out_v, out_v), jnp.float32) * 0.1}


def init_gvnorm(S):
    return {'ln_w': jnp.ones((S,), jnp.float32), 'ln_b': jnp.zeros((S,), jnp.float32),
            'gamma': jnp.float32(1.0), 'beta': jnp.float32(0.0)}


def init_ff(kg, S, V):        # GVFeedForward, multi=1
    return {'ff1': init_gvp(kg, S, V, S, V), 'ff2': init_gvl(kg, S, V, S, V)}


def init_gate_residue(kg, S, V):   # full_gate=True
    return {'gate': init_gvl(kg, 3 * S, 3 * V, S, V)}


def init_gate_norm_ff(kg, S, V):
    return {'ff': init_ff(kg, S, V), 'gate': init_gate_residue(kg, S, V),
            'norm': init_gvnorm(S)}


def init_message(kg, Sx, Vx, Se, Ve):
    return {'qkv': init_gvl(kg, Sx, Vx, 3 * Sx, 3 * Vx),
            'edge_k': init_gvl(kg, Se, Ve, Sx, Vx),
            'x_out': init_gvp(kg, Sx, Vx, Sx, Vx)}


def init_block(kg, Sx, Vx, Se, Ve):
    return {'message_update': {'msg': init_message(kg, Sx, Vx, Se, Ve),
                               'node_gate': init_gate_residue(kg, Sx, Vx),
                               'node_norm': init_gvnorm(Sx)},
            'node_ff': init_gate_norm_ff(kg, Sx, Vx)}


# ----------------------------------------------------------------------------
if __name__ == "__main__":
    # Config: x_sca_hidden=16, x_vec_hidden=8, edge_sca_hidden=8, edge_vec_hidden=4,
    #         n_head=2, dropout=0.0, full_gate=True, add_coor=False, update_edge=False
    Sx, Vx, Se, Ve, H = 16, 8, 8, 4, 2
    B, N = 2, 8

    kg = KeyGen(0)
    params = init_block(kg, Sx, Vx, Se, Ve)

    k1, k2, k3, k4 = jax.random.split(jax.random.PRNGKey(0), 4)
    x_sca = jax.random.normal(k1, (B, N, Sx), jnp.float32)
    x_vec = jax.random.normal(k2, (B, N, Vx, 3), jnp.float32)
    edge_sca = jax.random.normal(k3, (B, N, N, Se), jnp.float32)
    edge_vec = jax.random.normal(k4, (B, N, N, Ve, 3), jnp.float32)
    mask = jnp.array([[True] * N, [True] * (N - 2) + [False] * 2])

    fwd = jax.jit(functools.partial(gv_graph_transformer_block, n_head=H))
    (xs, xv), (es, ev) = fwd(params, x_sca, x_vec, edge_sca, edge_vec, mask)
    jax.block_until_ready((xs, xv, es, ev))

    assert xs.shape == (B, N, Sx) and xv.shape == (B, N, Vx, 3)
    assert es.shape == (B, N, N, Se) and ev.shape == (B, N, N, Ve, 3)
    print("KERNEL_OK")
</pallas_src>

<mosaic_0001>
module attributes {stable_mosaic.version = 11 : i64} {
  func.func @_attn_kernel(%arg0: i32, %arg1: i32, %arg2: memref<1x8x16xf32, #tpu.memory_space<vmem>>, %arg3: memref<1x8x24xf32, #tpu.memory_space<vmem>>, %arg4: memref<1x16x8xf32, #tpu.memory_space<vmem>>, %arg5: memref<1x24x8xf32, #tpu.memory_space<vmem>>, %arg6: memref<1x8x16x8xbf16, #tpu.memory_space<vmem>>, %arg7: memref<1x8x24x8xbf16, #tpu.memory_space<vmem>>, %arg8: memref<1x8x16xbf16, #tpu.memory_space<vmem>>, %arg9: memref<1x8x24xbf16, #tpu.memory_space<vmem>>, %arg10: memref<1x1x8xf32, #tpu.memory_space<vmem>>, %arg11: memref<1x8x40xf32, #tpu.memory_space<vmem>>) attributes {dimension_semantics = [#tpu.dimension_semantics<parallel>, #tpu.dimension_semantics<parallel>], iteration_bounds = array<i64: 2, 1>, scalar_prefetch = 0 : i64, scratch_operands = 0 : i64, tpu.core_type = #tpu.core_type<tc>, window_params = [{transform_indices = @transform_0, window_bounds = array<i64: 1, 8, 16>}, {transform_indices = @transform_1, window_bounds = array<i64: 1, 8, 24>}, {transform_indices = @transform_2, window_bounds = array<i64: 1, 16, 8>}, {transform_indices = @transform_3, window_bounds = array<i64: 1, 24, 8>}, {transform_indices = @transform_4, window_bounds = array<i64: 1, 8, 16, 8>}, {transform_indices = @transform_5, window_bounds = array<i64: 1, 8, 24, 8>}, {transform_indices = @transform_6, window_bounds = array<i64: 1, 8, 16>}, {transform_indices = @transform_7, window_bounds = array<i64: 1, 8, 24>}, {transform_indices = @transform_8, window_bounds = array<i64: 1, 1, 8>}, {transform_indices = @transform_9, window_bounds = array<i64: 1, 8, 40>}]} {
    %c0 = arith.constant 0 : index
    %c0_0 = arith.constant 0 : index
    %c0_1 = arith.constant 0 : index
    %0 = vector.load %arg2[%c0, %c0_0, %c0_1] : memref<1x8x16xf32, #tpu.memory_space<vmem>>, vector<1x8x16xf32>
    %1 = vector.shape_cast %0 : vector<1x8x16xf32> to vector<8x16xf32>
    %c0_2 = arith.constant 0 : index
    %c0_3 = arith.constant 0 : index
    %c0_4 = arith.constant 0 : index
    %2 = vector.load %arg3[%c0_2, %c0_3, %c0_4] : memref<1x8x24xf32, #tpu.memory_space<vmem>>, vector<1x8x24xf32>
    %3 = vector.shape_cast %2 : vector<1x8x24xf32> to vector<8x24xf32>
    %c0_5 = arith.constant 0 : index
    %c0_6 = arith.constant 0 : index
    %c0_7 = arith.constant 0 : index
    %4 = vector.load %arg4[%c0_5, %c0_6, %c0_7] : memref<1x16x8xf32, #tpu.memory_space<vmem>>, vector<1x16x8xf32>
    %5 = vector.shape_cast %4 : vector<1x16x8xf32> to vector<16x8xf32>
    %c0_8 = arith.constant 0 : index
    %c0_9 = arith.constant 0 : index
    %c0_10 = arith.constant 0 : index
    %6 = vector.load %arg5[%c0_8, %c0_9, %c0_10] : memref<1x24x8xf32, #tpu.memory_space<vmem>>, vector<1x24x8xf32>
    %7 = vector.shape_cast %6 : vector<1x24x8xf32> to vector<24x8xf32>
    %c0_11 = arith.constant 0 : index
    %c0_12 = arith.constant 0 : index
    %c0_13 = arith.constant 0 : index
    %c0_14 = arith.constant 0 : index
    %8 = vector.load %arg6[%c0_11, %c0_12, %c0_13, %c0_14] : memref<1x8x16x8xbf16, #tpu.memory_space<vmem>>, vector<1x8x16x8xbf16>
    %9 = vector.shape_cast %8 : vector<1x8x16x8xbf16> to vector<8x16x8xbf16>
    %10 = arith.extf %9 : vector<8x16x8xbf16> to vector<8x16x8xf32>
    %c0_15 = arith.constant 0 : index
    %c0_16 = arith.constant 0 : index
    %c0_17 = arith.constant 0 : index
    %c0_18 = arith.constant 0 : index
    %11 = vector.load %arg7[%c0_15, %c0_16, %c0_17, %c0_18] : memref<1x8x24x8xbf16, #tpu.memory_space<vmem>>, vector<1x8x24x8xbf16>
    %12 = vector.shape_cast %11 : vector<1x8x24x8xbf16> to vector<8x24x8xbf16>
    %13 = arith.extf %12 : vector<8x24x8xbf16> to vector<8x24x8xf32>
    %14 = vector.shape_cast %1 : vector<8x16xf32> to vector<8x16x1xf32>
    %15 = vector.shape_cast %5 : vector<16x8xf32> to vector<1x16x8xf32>
    %16 = vector.broadcast %14 : vector<8x16x1xf32> to vector<8x16x8xf32>
    %17 = vector.broadcast %15 : vector<1x16x8xf32> to vector<8x16x8xf32>
    %18 = arith.mulf %16, %17 : vector<8x16x8xf32>
    %19 = arith.mulf %18, %10 : vector<8x16x8xf32>
    %20 = vector.shape_cast %3 : vector<8x24xf32> to vector<8x24x1xf32>
    %21 = vector.shape_cast %7 : vector<24x8xf32> to vector<1x24x8xf32>
    %22 = vector.broadcast %20 : vector<8x24x1xf32> to vector<8x24x8xf32>
    %23 = vector.broadcast %21 : vector<1x24x8xf32> to vector<8x24x8xf32>
    %24 = arith.mulf %22, %23 : vector<8x24x8xf32>
    %25 = arith.mulf %24, %13 : vector<8x24x8xf32>
    %26 = vector.extract_strided_slice %19 {offsets = [0, 0, 0], sizes = [8, 8, 8], strides = [1, 1, 1]} : vector<8x16x8xf32> to vector<8x8x8xf32>
    %cst = arith.constant dense<0.000000e+00> : vector<8x8xf32>
    %27 = vector.multi_reduction <add>, %26, %cst [1] : vector<8x8x8xf32> to vector<8x8xf32>
    %28 = vector.shape_cast %27 : vector<8x8xf32> to vector<8x1x8xf32>
    %cst_19 = arith.constant 0.353553385 : f32
    %29 = vector.broadcast %cst_19 : f32 to vector<8x1x8xf32>
    %30 = arith.mulf %28, %29 : vector<8x1x8xf32>
    %31 = vector.extract_strided_slice %19 {offsets = [0, 8, 0], sizes = [8, 8, 8], strides = [1, 1, 1]} : vector<8x16x8xf32> to vector<8x8x8xf32>
    %cst_20 = arith.constant dense<0.000000e+00> : vector<8x8xf32>
    %32 = vector.multi_reduction <add>, %31, %cst_20 [1] : vector<8x8x8xf32> to vector<8x8xf32>
    %33 = vector.shape_cast %32 : vector<8x8xf32> to vector<8x1x8xf32>
    %cst_21 = arith.constant 0.353553385 : f32
    %34 = vector.broadcast %cst_21 : f32 to vector<8x1x8xf32>
    %35 = arith.mulf %33, %34 : vector<8x1x8xf32>
    %36 = vector.extract_strided_slice %25 {offsets = [0, 0, 0], sizes = [8, 12, 8], strides = [1, 1, 1]} : vector<8x24x8xf32> to vector<8x12x8xf32>
    %cst_22 = arith.constant dense<0.000000e+00> : vector<8x8xf32>
    %37 = vector.multi_reduction <add>, %36, %cst_22 [1] : vector<8x12x8xf32> to vector<8x8xf32>
    %38 = vector.shape_cast %37 : vector<8x8xf32> to vector<8x1x8xf32>
    %cst_23 = arith.constant 0.288675129 : f32
    %39 = vector.broadcast %cst_23 : f32 to vector<8x1x8xf32>
    %40 = arith.mulf %38, %39 : vector<8x1x8xf32>
    %41 = vector.extract_strided_slice %25 {offsets = [0, 12, 0], sizes = [8, 12, 8], strides = [1, 1, 1]} : vector<8x24x8xf32> to vector<8x12x8xf32>
    %cst_24 = arith.constant dense<0.000000e+00> : vector<8x8xf32>
    %42 = vector.multi_reduction <add>, %41, %cst_24 [1] : vector<8x12x8xf32> to vector<8x8xf32>
    %43 = vector.shape_cast %42 : vector<8x8xf32> to vector<8x1x8xf32>
    %cst_25 = arith.constant 0.288675129 : f32
    %44 = vector.broadcast %cst_25 : f32 to vector<8x1x8xf32>
    %45 = arith.mulf %43, %44 : vector<8x1x8xf32>
    %46 = tpu.concatenate %30, %35, %40, %45 in 1 : vector<8x1x8xf32>, vector<8x1x8xf32>, vector<8x1x8xf32>, vector<8x1x8xf32> -> vector<8x4x8xf32>
    %c0_26 = arith.constant 0 : index
    %c0_27 = arith.constant 0 : index
    %c0_28 = arith.constant 0 : index
    %47 = vector.load %arg10[%c0_26, %c0_27, %c0_28] : memref<1x1x8xf32, #tpu.memory_space<vmem>>, vector<1x1x8xf32>
    %48 = vector.shape_cast %47 : vector<1x1x8xf32> to vector<1x8xf32>
    %cst_29 = arith.constant 5.000000e-01 : f32
    %49 = vector.broadcast %cst_29 : f32 to vector<1x8xf32>
    %50 = arith.cmpf ogt, %48, %49 : vector<1x8xf32>
    %51 = vector.shape_cast %50 : vector<1x8xi1> to vector<1x1x8xi1>
    %cst_30 = arith.constant -3.40282347E+38 : f32
    %52 = vector.shape_cast %51 : vector<1x1x8xi1> to vector<1x1x8xi1>
    %53 = vector.broadcast %52 : vector<1x1x8xi1> to vector<8x4x8xi1>
    %54 = vector.broadcast %cst_30 : f32 to vector<8x4x8xf32>
    %55 = arith.select %53, %46, %54 : vector<8x4x8xi1>, vector<8x4x8xf32>
    %cst_31 = arith.constant dense<0xFF800000> : vector<8x4xf32>
    %56 = vector.multi_reduction <maximumf>, %55, %cst_31 [2] : vector<8x4x8xf32> to vector<8x4xf32>
    %57 = vector.shape_cast %56 : vector<8x4xf32> to vector<8x4x1xf32>
    %58 = vector.broadcast %57 : vector<8x4x1xf32> to vector<8x4x8xf32>
    %59 = arith.subf %55, %58 : vector<8x4x8xf32>
    %60 = math.exp %59 : vector<8x4x8xf32>
    %cst_32 = arith.constant dense<0.000000e+00> : vector<8x4xf32>
    %61 = vector.multi_reduction <add>, %60, %cst_32 [2] : vector<8x4x8xf32> to vector<8x4xf32>
    %62 = vector.shape_cast %61 : vector<8x4xf32> to vector<8x4x1xf32>
    %63 = tpu.reciprocal %62 {approx = true} : vector<8x4x1xf32> -> vector<8x4x1xf32>
    %64 = vector.broadcast %63 : vector<8x4x1xf32> to vector<8x4x8xf32>
    %65 = arith.mulf %60, %64 : vector<8x4x8xf32>
    %c0_33 = arith.constant 0 : index
    %c0_34 = arith.constant 0 : index
    %c0_35 = arith.constant 0 : index
    %66 = vector.load %arg8[%c0_33, %c0_34, %c0_35] : memref<1x8x16xbf16, #tpu.memory_space<vmem>>, vector<1x8x16xbf16>
    %67 = vector.shape_cast %66 : vector<1x8x16xbf16> to vector<8x16xbf16>
    %c0_36 = arith.constant 0 : index
    %c0_37 = arith.constant 0 : index
    %c0_38 = arith.constant 0 : index
    %68 = vector.load %arg9[%c0_36, %c0_37, %c0_38] : memref<1x8x24xbf16, #tpu.memory_space<vmem>>, vector<1x8x24xbf16>
    %69 = vector.shape_cast %68 : vector<1x8x24xbf16> to vector<8x24xbf16>
    %70 = arith.truncf %65 : vector<8x4x8xf32> to vector<8x4x8xbf16>
    %71 = vector.extract_strided_slice %70 {offsets = [0, 0, 0], sizes = [8, 1, 8], strides = [1, 1, 1]} : vector<8x4x8xbf16> to vector<8x1x8xbf16>
    %72 = vector.shape_cast %71 : vector<8x1x8xbf16> to vector<8x8xbf16>
    %73 = vector.extract_strided_slice %67 {offsets = [0, 0], sizes = [8, 8], strides = [1, 1]} : vector<8x16xbf16> to vector<8x8xbf16>
    %cst_39 = arith.constant dense<0.000000e+00> : vector<8x8xf32>
    %74 = tpu.matmul %72, %73, %cst_39 {dimension_numbers = #tpu.dot_dimension_numbers<[1], [0], [0], [1], [0, 0, 1, 1], [], []>} : vector<8x8xbf16>, vector<8x8xbf16>, vector<8x8xf32> -> vector<8x8xf32>
    %c0_40 = arith.constant 0 : index
    %c0_41 = arith.constant 0 : index
    %c0_42 = arith.constant 0 : index
    %75 = vector.load %arg11[%c0_40, %c0_41, %c0_42] : memref<1x8x40xf32, #tpu.memory_space<vmem>>, vector<1x8x8xf32>
    %76 = vector.shape_cast %75 : vector<1x8x8xf32> to vector<8x8xf32>
    %77 = vector.shape_cast %74 : vector<8x8xf32> to vector<1x8x8xf32>
    tpu.vector_store %arg11[%c0_40, %c0_41, %c0_42], %77 {strides = array<i32>} : memref<1x8x40xf32, #tpu.memory_space<vmem>>, vector<1x8x8xf32>,
    %78 = vector.extract_strided_slice %70 {offsets = [0, 1, 0], sizes = [8, 1, 8], strides = [1, 1, 1]} : vector<8x4x8xbf16> to vector<8x1x8xbf16>
    %79 = vector.shape_cast %78 : vector<8x1x8xbf16> to vector<8x8xbf16>
    %80 = vector.extract_strided_slice %67 {offsets = [0, 8], sizes = [8, 8], strides = [1, 1]} : vector<8x16xbf16> to vector<8x8xbf16>
    %cst_43 = arith.constant dense<0.000000e+00> : vector<8x8xf32>
    %81 = tpu.matmul %79, %80, %cst_43 {dimension_numbers = #tpu.dot_dimension_numbers<[1], [0], [0], [1], [0, 0, 1, 1], [], []>} : vector<8x8xbf16>, vector<8x8xbf16>, vector<8x8xf32> -> vector<8x8xf32>
    %c0_44 = arith.constant 0 : index
    %c0_45 = arith.constant 0 : index
    %c8 = arith.constant 8 : index
    %82 = vector.load %arg11[%c0_44, %c0_45, %c8] : memref<1x8x40xf32, #tpu.memory_space<vmem>>, vector<1x8x8xf32>
    %83 = vector.shape_cast %82 : vector<1x8x8xf32> to vector<8x8xf32>
    %84 = vector.shape_cast %81 : vector<8x8xf32> to vector<1x8x8xf32>
    tpu.vector_store %arg11[%c0_44, %c0_45, %c8], %84 {strides = array<i32>} : memref<1x8x40xf32, #tpu.memory_space<vmem>>, vector<1x8x8xf32>,
    %85 = vector.extract_strided_slice %70 {offsets = [0, 2, 0], sizes = [8, 1, 8], strides = [1, 1, 1]} : vector<8x4x8xbf16> to vector<8x1x8xbf16>
    %86 = vector.shape_cast %85 : vector<8x1x8xbf16> to vector<8x8xbf16>
    %87 = vector.extract_strided_slice %69 {offsets = [0, 0], sizes = [8, 12], strides = [1, 1]} : vector<8x24xbf16> to vector<8x12xbf16>
    %cst_46 = arith.constant dense<0.000000e+00> : vector<8x12xf32>
    %88 = tpu.matmul %86, %87, %cst_46 {dimension_numbers = #tpu.dot_dimension_numbers<[1], [0], [0], [1], [0, 0, 1, 1], [], []>} : vector<8x8xbf16>, vector<8x12xbf16>, vector<8x12xf32> -> vector<8x12xf32>
    %c0_47 = arith.constant 0 : index
    %c0_48 = arith.constant 0 : index
    %c16 = arith.constant 16 : index
    %89 = vector.load %arg11[%c0_47, %c0_48, %c16] : memref<1x8x40xf32, #tpu.memory_space<vmem>>, vector<1x8x12xf32>
    %90 = vector.shape_cast %89 : vector<1x8x12xf32> to vector<8x12xf32>
    %91 = vector.shape_cast %88 : vector<8x12xf32> to vector<1x8x12xf32>
    tpu.vector_store %arg11[%c0_47, %c0_48, %c16], %91 {strides = array<i32>} : memref<1x8x40xf32, #tpu.memory_space<vmem>>, vector<1x8x12xf32>,
    %92 = vector.extract_strided_slice %70 {offsets = [0, 3, 0], sizes = [8, 1, 8], strides = [1, 1, 1]} : vector<8x4x8xbf16> to vector<8x1x8xbf16>
    %93 = vector.shape_cast %92 : vector<8x1x8xbf16> to vector<8x8xbf16>
    %94 = vector.extract_strided_slice %69 {offsets = [0, 12], sizes = [8, 12], strides = [1, 1]} : vector<8x24xbf16> to vector<8x12xbf16>
    %cst_49 = arith.constant dense<0.000000e+00> : vector<8x12xf32>
    %95 = tpu.matmul %93, %94, %cst_49 {dimension_numbers = #tpu.dot_dimension_numbers<[1], [0], [0], [1], [0, 0, 1, 1], [], []>} : vector<8x8xbf16>, vector<8x12xbf16>, vector<8x12xf32> -> vector<8x12xf32>
    %c0_50 = arith.constant 0 : index
    %c0_51 = arith.constant 0 : index
    %c28 = arith.constant 28 : index
    %96 = vector.load %arg11[%c0_50, %c0_51, %c28] : memref<1x8x40xf32, #tpu.memory_space<vmem>>, vector<1x8x12xf32>
    %97 = vector.shape_cast %96 : vector<1x8x12xf32> to vector<8x12xf32>
    %98 = vector.shape_cast %95 : vector<8x12xf32> to vector<1x8x12xf32>
    tpu.vector_store %arg11[%c0_50, %c0_51, %c28], %98 {strides = array<i32>} : memref<1x8x40xf32, #tpu.memory_space<vmem>>, vector<1x8x12xf32>,
    return
  }
  func.func @transform_0(%arg0: i32, %arg1: i32) -> (i32, i32, i32) {
    %c0_i32 = arith.constant 0 : i32
    %c0_i32_0 = arith.constant 0 : i32
    return %arg0, %arg1, %c0_i32 : i32, i32, i32
  }
  func.func @transform_1(%arg0: i32, %arg1: i32) -> (i32, i32, i32) {
    %c0_i32 = arith.constant 0 : i32
    %c0_i32_0 = arith.constant 0 : i32
    return %arg0, %arg1, %c0_i32 : i32, i32, i32
  }
  func.func @transform_2(%arg0: i32, %arg1: i32) -> (i32, i32, i32) {
    %c0_i32 = arith.constant 0 : i32
    %c0_i32_0 = arith.constant 0 : i32
    %c0_i32_1 = arith.constant 0 : i32
    return %arg0, %c0_i32, %c0_i32_0 : i32, i32, i32
  }
  func.func @transform_3(%arg0: i32, %arg1: i32) -> (i32, i32, i32) {
    %c0_i32 = arith.constant 0 : i32
    %c0_i32_0 = arith.constant 0 : i32
    %c0_i32_1 = arith.constant 0 : i32
    return %arg0, %c0_i32, %c0_i32_0 : i32, i32, i32
  }
  func.func @transform_4(%arg0: i32, %arg1: i32) -> (i32, i32, i32, i32) {
    %c0_i32 = arith.constant 0 : i32
    %c0_i32_0 = arith.constant 0 : i32
    %c0_i32_1 = arith.constant 0 : i32
    return %arg0, %arg1, %c0_i32, %c0_i32_0 : i32, i32, i32, i32
  }
  func.func @transform_5(%arg0: i32, %arg1: i32) -> (i32, i32, i32, i32) {
    %c0_i32 = arith.constant 0 : i32
    %c0_i32_0 = arith.constant 0 : i32
    %c0_i32_1 = arith.constant 0 : i32
    return %arg0, %arg1, %c0_i32, %c0_i32_0 : i32, i32, i32, i32
  }
  func.func @transform_6(%arg0: i32, %arg1: i32) -> (i32, i32, i32) {
    %c0_i32 = arith.constant 0 : i32
    %c0_i32_0 = arith.constant 0 : i32
    %c0_i32_1 = arith.constant 0 : i32
    return %arg0, %c0_i32, %c0_i32_0 : i32, i32, i32
  }
  func.func @transform_7(%arg0: i32, %arg1: i32) -> (i32, i32, i32) {
    %c0_i32 = arith.constant 0 : i32
    %c0_i32_0 = arith.constant 0 : i32
    %c0_i32_1 = arith.constant 0 : i32
    return %arg0, %c0_i32, %c0_i32_0 : i32, i32, i32
  }
  func.func @transform_8(%arg0: i32, %arg1: i32) -> (i32, i32, i32) {
    %c0_i32 = arith.constant 0 : i32
    %c0_i32_0 = arith.constant 0 : i32
    %c0_i32_1 = arith.constant 0 : i32
    return %arg0, %c0_i32, %c0_i32_0 : i32, i32, i32
  }
  func.func @transform_9(%arg0: i32, %arg1: i32) -> (i32, i32, i32) {
    %c0_i32 = arith.constant 0 : i32
    %c0_i32_0 = arith.constant 0 : i32
    return %arg0, %arg1, %c0_i32 : i32, i32, i32
  }
}

module attributes {stable_mosaic.version = 11 : i64} {
  func.func @_gvnorm_kernel(%arg0: i32, %arg1: memref<16x16xf32, #tpu.memory_space<vmem>>, %arg2: memref<16x24xf32, #tpu.memory_space<vmem>>, %arg3: memref<1x16xf32, #tpu.memory_space<vmem>>, %arg4: memref<1x16xf32, #tpu.memory_space<vmem>>, %arg5: memref<1x24xf32, #tpu.memory_space<vmem>>, %arg6: memref<1x24xf32, #tpu.memory_space<vmem>>, %arg7: memref<16x16xf32, #tpu.memory_space<vmem>>, %arg8: memref<16x24xf32, #tpu.memory_space<vmem>>) attributes {dimension_semantics = [#tpu.dimension_semantics<parallel>], iteration_bounds = array<i64: 1>, scalar_prefetch = 0 : i64, scratch_operands = 0 : i64, tpu.core_type = #tpu.core_type<tc>, window_params = [{transform_indices = @transform_0, window_bounds = array<i64: 16, 16>}, {transform_indices = @transform_1, window_bounds = array<i64: 16, 24>}, {pipeline_mode = #tpu.pipeline_mode<synchronous>, transform_indices = @transform_2, window_bounds = array<i64: 1, 16>}, {pipeline_mode = #tpu.pipeline_mode<synchronous>, transform_indices = @transform_3, window_bounds = array<i64: 1, 16>}, {pipeline_mode = #tpu.pipeline_mode<synchronous>, transform_indices = @transform_4, window_bounds = array<i64: 1, 24>}, {pipeline_mode = #tpu.pipeline_mode<synchronous>, transform_indices = @transform_5, window_bounds = array<i64: 1, 24>}, {transform_indices = @transform_6, window_bounds = array<i64: 16, 16>}, {transform_indices = @transform_7, window_bounds = array<i64: 16, 24>}]} {
    %c0 = arith.constant 0 : index
    %c0_0 = arith.constant 0 : index
    %0 = vector.load %arg1[%c0, %c0_0] : memref<16x16xf32, #tpu.memory_space<vmem>>, vector<16x16xf32>
    %cst = arith.constant dense<0.000000e+00> : vector<16xf32>
    %1 = vector.multi_reduction <add>, %0, %cst [1] : vector<16x16xf32> to vector<16xf32>
    %2 = vector.shape_cast %1 : vector<16xf32> to vector<16x1xf32>
    %cst_1 = arith.constant 1.600000e+01 : f32
    %3 = vector.broadcast %cst_1 : f32 to vector<16x1xf32>
    %4 = arith.divf %2, %3 : vector<16x1xf32>
    %5 = vector.broadcast %4 : vector<16x1xf32> to vector<16x16xf32>
    %6 = arith.subf %0, %5 : vector<16x16xf32>
    %7 = arith.mulf %6, %6 : vector<16x16xf32>
    %cst_2 = arith.constant dense<0.000000e+00> : vector<16xf32>
    %8 = vector.multi_reduction <add>, %7, %cst_2 [1] : vector<16x16xf32> to vector<16xf32>
    %9 = vector.shape_cast %8 : vector<16xf32> to vector<16x1xf32>
    %cst_3 = arith.constant 1.600000e+01 : f32
    %10 = vector.broadcast %cst_3 : f32 to vector<16x1xf32>
    %11 = arith.divf %9, %10 : vector<16x1xf32>
    %12 = vector.broadcast %4 : vector<16x1xf32> to vector<16x16xf32>
    %13 = arith.subf %0, %12 : vector<16x16xf32>
    %cst_4 = arith.constant 9.99999974E-6 : f32
    %14 = vector.broadcast %cst_4 : f32 to vector<16x1xf32>
    %15 = arith.addf %11, %14 : vector<16x1xf32>
    %16 = math.rsqrt %15 : vector<16x1xf32>
    %17 = vector.broadcast %16 : vector<16x1xf32> to vector<16x16xf32>
    %18 = arith.mulf %13, %17 : vector<16x16xf32>
    %c0_5 = arith.constant 0 : index
    %c0_6 = arith.constant 0 : index
    %19 = vector.load %arg3[%c0_5, %c0_6] : memref<1x16xf32, #tpu.memory_space<vmem>>, vector<1x16xf32>
    %20 = vector.broadcast %19 : vector<1x16xf32> to vector<16x16xf32>
    %21 = arith.mulf %18, %20 : vector<16x16xf32>
    %c0_7 = arith.constant 0 : index
    %c0_8 = arith.constant 0 : index
    %22 = vector.load %arg4[%c0_7, %c0_8] : memref<1x16xf32, #tpu.memory_space<vmem>>, vector<1x16xf32>
    %23 = vector.broadcast %22 : vector<1x16xf32> to vector<16x16xf32>
    %24 = arith.addf %21, %23 : vector<16x16xf32>
    %c0_9 = arith.constant 0 : index
    %c0_10 = arith.constant 0 : index
    %25 = vector.load %arg7[%c0_9, %c0_10] : memref<16x16xf32, #tpu.memory_space<vmem>>, vector<16x16xf32>
    tpu.vector_store %arg7[%c0_9, %c0_10], %24 {strides = array<i32>} : memref<16x16xf32, #tpu.memory_space<vmem>>, vector<16x16xf32>,
    %c0_11 = arith.constant 0 : index
    %c0_12 = arith.constant 0 : index
    %26 = vector.load %arg2[%c0_11, %c0_12] : memref<16x24xf32, #tpu.memory_space<vmem>>, vector<16x24xf32>
    %cst_13 = arith.constant 0.000000e+00 : f32
    %27 = vector.broadcast %cst_13 : f32 to vector<16x24xf32>
    %28 = arith.cmpf one, %26, %27 : vector<16x24xf32>
    %29 = arith.extui %28 : vector<16x24xi1> to vector<16x24xi32>
    %30 = arith.sitofp %29 : vector<16x24xi32> to vector<16x24xf32>
    %31 = arith.mulf %26, %26 : vector<16x24xf32>
    %cst_14 = arith.constant dense<0.000000e+00> : vector<16xf32>
    %32 = vector.multi_reduction <add>, %31, %cst_14 [1] : vector<16x24xf32> to vector<16xf32>
    %33 = vector.shape_cast %32 : vector<16xf32> to vector<16x1xf32>
    %cst_15 = arith.constant 9.99999993E-9 : f32
    %34 = vector.broadcast %cst_15 : f32 to vector<16x1xf32>
    %35 = arith.addf %33, %34 : vector<16x1xf32>
    %cst_16 = arith.constant 8.000000e+00 : f32
    %36 = vector.broadcast %cst_16 : f32 to vector<16x1xf32>
    %37 = arith.divf %35, %36 : vector<16x1xf32>
    %38 = math.rsqrt %37 : vector<16x1xf32>
    %39 = vector.broadcast %38 : vector<16x1xf32> to vector<16x24xf32>
    %40 = arith.mulf %26, %39 : vector<16x24xf32>
    %41 = arith.mulf %40, %30 : vector<16x24xf32>
    %c0_17 = arith.constant 0 : index
    %c0_18 = arith.constant 0 : index
    %42 = vector.load %arg5[%c0_17, %c0_18] : memref<1x24xf32, #tpu.memory_space<vmem>>, vector<1x24xf32>
    %43 = vector.broadcast %42 : vector<1x24xf32> to vector<16x24xf32>
    %44 = arith.mulf %41, %43 : vector<16x24xf32>
    %c0_19 = arith.constant 0 : index
    %c0_20 = arith.constant 0 : index
    %45 = vector.load %arg6[%c0_19, %c0_20] : memref<1x24xf32, #tpu.memory_space<vmem>>, vector<1x24xf32>
    %46 = vector.broadcast %45 : vector<1x24xf32> to vector<16x24xf32>
    %47 = arith.addf %44, %46 : vector<16x24xf32>
    %c0_21 = arith.constant 0 : index
    %c0_22 = arith.constant 0 : index
    %48 = vector.load %arg8[%c0_21, %c0_22] : memref<16x24xf32, #tpu.memory_space<vmem>>, vector<16x24xf32>
    tpu.vector_store %arg8[%c0_21, %c0_22], %47 {strides = array<i32>} : memref<16x24xf32, #tpu.memory_space<vmem>>, vector<16x24xf32>,
    return
  }
  func.func @transform_0(%arg0: i32) -> (i32, i32) {
    %c0_i32 = arith.constant 0 : i32
    %c0_i32_0 = arith.constant 0 : i32
    return %arg0, %c0_i32 : i32, i32
  }
  func.func @transform_1(%arg0: i32) -> (i32, i32) {
    %c0_i32 = arith.constant 0 : i32
    %c0_i32_0 = arith.constant 0 : i32
    return %arg0, %c0_i32 : i32, i32
  }
  func.func @transform_2(%arg0: i32) -> (i32, i32) {
    %c0_i32 = arith.constant 0 : i32
    %c0_i32_0 = arith.constant 0 : i32
    %c0_i32_1 = arith.constant 0 : i32
    return %c0_i32, %c0_i32_0 : i32, i32
  }
  func.func @transform_3(%arg0: i32) -> (i32, i32) {
    %c0_i32 = arith.constant 0 : i32
    %c0_i32_0 = arith.constant 0 : i32
    %c0_i32_1 = arith.constant 0 : i32
    return %c0_i32, %c0_i32_0 : i32, i32
  }
  func.func @transform_4(%arg0: i32) -> (i32, i32) {
    %c0_i32 = arith.constant 0 : i32
    %c0_i32_0 = arith.constant 0 : i32
    %c0_i32_1 = arith.constant 0 : i32
    return %c0_i32, %c0_i32_0 : i32, i32
  }
  func.func @transform_5(%arg0: i32) -> (i32, i32) {
    %c0_i32 = arith.constant 0 : i32
    %c0_i32_0 = arith.constant 0 : i32
    %c0_i32_1 = arith.constant 0 : i32
    return %c0_i32, %c0_i32_0 : i32, i32
  }
  func.func @transform_6(%arg0: i32) -> (i32, i32) {
    %c0_i32 = arith.constant 0 : i32
    %c0_i32_0 = arith.constant 0 : i32
    return %arg0, %c0_i32 : i32, i32
  }
  func.func @transform_7(%arg0: i32) -> (i32, i32) {
    %c0_i32 = arith.constant 0 : i32
    %c0_i32_0 = arith.constant 0 : i32
    return %arg0, %c0_i32 : i32, i32
  }
}

module attributes {stable_mosaic.version = 11 : i64} {
  func.func @_gvnorm_kernel(%arg0: i32, %arg1: memref<16x16xf32, #tpu.memory_space<vmem>>, %arg2: memref<16x24xf32, #tpu.memory_space<vmem>>, %arg3: memref<1x16xf32, #tpu.memory_space<vmem>>, %arg4: memref<1x16xf32, #tpu.memory_space<vmem>>, %arg5: memref<1x24xf32, #tpu.memory_space<vmem>>, %arg6: memref<1x24xf32, #tpu.memory_space<vmem>>, %arg7: memref<16x16xf32, #tpu.memory_space<vmem>>, %arg8: memref<16x24xf32, #tpu.memory_space<vmem>>) attributes {dimension_semantics = [#tpu.dimension_semantics<parallel>], iteration_bounds = array<i64: 1>, scalar_prefetch = 0 : i64, scratch_operands = 0 : i64, tpu.core_type = #tpu.core_type<tc>, window_params = [{transform_indices = @transform_0, window_bounds = array<i64: 16, 16>}, {transform_indices = @transform_1, window_bounds = array<i64: 16, 24>}, {pipeline_mode = #tpu.pipeline_mode<synchronous>, transform_indices = @transform_2, window_bounds = array<i64: 1, 16>}, {pipeline_mode = #tpu.pipeline_mode<synchronous>, transform_indices = @transform_3, window_bounds = array<i64: 1, 16>}, {pipeline_mode = #tpu.pipeline_mode<synchronous>, transform_indices = @transform_4, window_bounds = array<i64: 1, 24>}, {pipeline_mode = #tpu.pipeline_mode<synchronous>, transform_indices = @transform_5, window_bounds = array<i64: 1, 24>}, {transform_indices = @transform_6, window_bounds = array<i64: 16, 16>}, {transform_indices = @transform_7, window_bounds = array<i64: 16, 24>}]} {
    %c0 = arith.constant 0 : index
    %c0_0 = arith.constant 0 : index
    %0 = vector.load %arg1[%c0, %c0_0] : memref<16x16xf32, #tpu.memory_space<vmem>>, vector<16x16xf32>
    %cst = arith.constant dense<0.000000e+00> : vector<16xf32>
    %1 = vector.multi_reduction <add>, %0, %cst [1] : vector<16x16xf32> to vector<16xf32>
    %2 = vector.shape_cast %1 : vector<16xf32> to vector<16x1xf32>
    %cst_1 = arith.constant 1.600000e+01 : f32
    %3 = vector.broadcast %cst_1 : f32 to vector<16x1xf32>
    %4 = arith.divf %2, %3 : vector<16x1xf32>
    %5 = vector.broadcast %4 : vector<16x1xf32> to vector<16x16xf32>
    %6 = arith.subf %0, %5 : vector<16x16xf32>
    %7 = arith.mulf %6, %6 : vector<16x16xf32>
    %cst_2 = arith.constant dense<0.000000e+00> : vector<16xf32>
    %8 = vector.multi_reduction <add>, %7, %cst_2 [1] : vector<16x16xf32> to vector<16xf32>
    %9 = vector.shape_cast %8 : vector<16xf32> to vector<16x1xf32>
    %cst_3 = arith.constant 1.600000e+01 : f32
    %10 = vector.broadcast %cst_3 : f32 to vector<16x1xf32>
    %11 = arith.divf %9, %10 : vector<16x1xf32>
    %12 = vector.broadcast %4 : vector<16x1xf32> to vector<16x16xf32>
    %13 = arith.subf %0, %12 : vector<16x16xf32>
    %cst_4 = arith.constant 9.99999974E-6 : f32
    %14 = vector.broadcast %cst_4 : f32 to vector<16x1xf32>
    %15 = arith.addf %11, %14 : vector<16x1xf32>
    %16 = math.rsqrt %15 : vector<16x1xf32>
    %17 = vector.broadcast %16 : vector<16x1xf32> to vector<16x16xf32>
    %18 = arith.mulf %13, %17 : vector<16x16xf32>
    %c0_5 = arith.constant 0 : index
    %c0_6 = arith.constant 0 : index
    %19 = vector.load %arg3[%c0_5, %c0_6] : memref<1x16xf32, #tpu.memory_space<vmem>>, vector<1x16xf32>
    %20 = vector.broadcast %19 : vector<1x16xf32> to vector<16x16xf32>
    %21 = arith.mulf %18, %20 : vector<16x16xf32>
    %c0_7 = arith.constant 0 : index
    %c0_8 = arith.constant 0 : index
    %22 = vector.load %arg4[%c0_7, %c0_8] : memref<1x16xf32, #tpu.memory_space<vmem>>, vector<1x16xf32>
    %23 = vector.broadcast %22 : vector<1x16xf32> to vector<16x16xf32>
    %24 = arith.addf %21, %23 : vector<16x16xf32>
    %c0_9 = arith.constant 0 : index
    %c0_10 = arith.constant 0 : index
    %25 = vector.load %arg7[%c0_9, %c0_10] : memref<16x16xf32, #tpu.memory_space<vmem>>, vector<16x16xf32>
    tpu.vector_store %arg7[%c0_9, %c0_10], %24 {strides = array<i32>} : memref<16x16xf32, #tpu.memory_space<vmem>>, vector<16x16xf32>,
    %c0_11 = arith.constant 0 : index
    %c0_12 = arith.constant 0 : index
    %26 = vector.load %arg2[%c0_11, %c0_12] : memref<16x24xf32, #tpu.memory_space<vmem>>, vector<16x24xf32>
    %cst_13 = arith.constant 0.000000e+00 : f32
    %27 = vector.broadcast %cst_13 : f32 to vector<16x24xf32>
    %28 = arith.cmpf one, %26, %27 : vector<16x24xf32>
    %29 = arith.extui %28 : vector<16x24xi1> to vector<16x24xi32>
    %30 = arith.sitofp %29 : vector<16x24xi32> to vector<16x24xf32>
    %31 = arith.mulf %26, %26 : vector<16x24xf32>
    %cst_14 = arith.constant dense<0.000000e+00> : vector<16xf32>
    %32 = vector.multi_reduction <add>, %31, %cst_14 [1] : vector<16x24xf32> to vector<16xf32>
    %33 = vector.shape_cast %32 : vector<16xf32> to vector<16x1xf32>
    %cst_15 = arith.constant 9.99999993E-9 : f32
    %34 = vector.broadcast %cst_15 : f32 to vector<16x1xf32>
    %35 = arith.addf %33, %34 : vector<16x1xf32>
    %cst_16 = arith.constant 8.000000e+00 : f32
    %36 = vector.broadcast %cst_16 : f32 to vector<16x1xf32>
    %37 = arith.divf %35, %36 : vector<16x1xf32>
    %38 = math.rsqrt %37 : vector<16x1xf32>
    %39 = vector.broadcast %38 : vector<16x1xf32> to vector<16x24xf32>
    %40 = arith.mulf %26, %39 : vector<16x24xf32>
    %41 = arith.mulf %40, %30 : vector<16x24xf32>
    %c0_17 = arith.constant 0 : index
    %c0_18 = arith.constant 0 : index
    %42 = vector.load %arg5[%c0_17, %c0_18] : memref<1x24xf32, #tpu.memory_space<vmem>>, vector<1x24xf32>
    %43 = vector.broadcast %42 : vector<1x24xf32> to vector<16x24xf32>
    %44 = arith.mulf %41, %43 : vector<16x24xf32>
    %c0_19 = arith.constant 0 : index
    %c0_20 = arith.constant 0 : index
    %45 = vector.load %arg6[%c0_19, %c0_20] : memref<1x24xf32, #tpu.memory_space<vmem>>, vector<1x24xf32>
    %46 = vector.broadcast %45 : vector<1x24xf32> to vector<16x24xf32>
    %47 = arith.addf %44, %46 : vector<16x24xf32>
    %c0_21 = arith.constant 0 : index
    %c0_22 = arith.constant 0 : index
    %48 = vector.load %arg8[%c0_21, %c0_22] : memref<16x24xf32, #tpu.memory_space<vmem>>, vector<16x24xf32>
    tpu.vector_store %arg8[%c0_21, %c0_22], %47 {strides = array<i32>} : memref<16x24xf32, #tpu.memory_space<vmem>>, vector<16x24xf32>,
    return
  }
  func.func @transform_0(%arg0: i32) -> (i32, i32) {
    %c0_i32 = arith.constant 0 : i32
    %c0_i32_0 = arith.constant 0 : i32
    return %arg0, %c0_i32 : i32, i32
  }
  func.func @transform_1(%arg0: i32) -> (i32, i32) {
    %c0_i32 = arith.constant 0 : i32
    %c0_i32_0 = arith.constant 0 : i32
    return %arg0, %c0_i32 : i32, i32
  }
  func.func @transform_2(%arg0: i32) -> (i32, i32) {
    %c0_i32 = arith.constant 0 : i32
    %c0_i32_0 = arith.constant 0 : i32
    %c0_i32_1 = arith.constant 0 : i32
    return %c0_i32, %c0_i32_0 : i32, i32
  }
  func.func @transform_3(%arg0: i32) -> (i32, i32) {
    %c0_i32 = arith.constant 0 : i32
    %c0_i32_0 = arith.constant 0 : i32
    %c0_i32_1 = arith.constant 0 : i32
    return %c0_i32, %c0_i32_0 : i32, i32
  }
  func.func @transform_4(%arg0: i32) -> (i32, i32) {
    %c0_i32 = arith.constant 0 : i32
    %c0_i32_0 = arith.constant 0 : i32
    %c0_i32_1 = arith.constant 0 : i32
    return %c0_i32, %c0_i32_0 : i32, i32
  }
  func.func @transform_5(%arg0: i32) -> (i32, i32) {
    %c0_i32 = arith.constant 0 : i32
    %c0_i32_0 = arith.constant 0 : i32
    %c0_i32_1 = arith.constant 0 : i32
    return %c0_i32, %c0_i32_0 : i32, i32
  }
  func.func @transform_6(%arg0: i32) -> (i32, i32) {
    %c0_i32 = arith.constant 0 : i32
    %c0_i32_0 = arith.constant 0 : i32
    return %arg0, %c0_i32 : i32, i32
  }
  func.func @transform_7(%arg0: i32) -> (i32, i32) {
    %c0_i32 = arith.constant 0 : i32
    %c0_i32_0 = arith.constant 0 : i32
    return %arg0, %c0_i32 : i32, i32
  }
}

</mosaic_0001>

<llo_original>
// kernel: split.17
$region0: #{split.17}
  #allocation0 [shape = 'u32[2048]{0}', space=vmem, size = 0x2000, scoped, tag = 'scoped memory for split.17']
  #allocation1 [shape = 'u32[2048]{0}', space=vmem, size = 0x2000, scoped, tag = 'scoped memory for split.17']
  #allocation2 [shape = 'u32[2048]{0}', space=vmem, size = 0x2000, scoped, tag = 'scoped memory for split.17']
  #allocation3 [shape = 'u32[2048]{0}', space=vmem, size = 0x2000, scoped, tag = 'scoped memory for split.17']
  #allocation4 [shape = 'u32[2048]{0}', space=vmem, size = 0x2000, scoped, tag = 'scoped memory for split.17']
  #allocation5 [shape = 's32[1]{0}', space=sflag, size = 0x4, scoped, tag = 'scoped memory for split.17']
  %s0 = inlined_call_operand.vmem [shape: f32[2,8,24,3], index: 0, kind: input, shape index: {}]
  %s1 = inlined_call_operand.vmem [shape: bf16[2,8,8,3], index: 1, kind: output, shape index: {}]
  %v2 = vld [vmem:[%s0] sm:$0xff]
  %v3 = vlaneseq
  %v4 = vand.u32 %v3, 127
  %vm5 = vcmp.lt.s32.totalorder %v4, 16
  %v6 = vsel %vm5, 0, %v2
  %7 = vrot.lane.b32.xlu0 %v6, 112
  %v8 = vpop.permute.xlu0 %7
  %v9 = vpack.i.bf16 %v8, 0.0
  %v10 = vpack.c.bf16 0.0, %v9
  %11 = vst [vmem:[%s1] sm:$0xf] %v10
  %s12 = scalar_lea.vmem %s0, 24
  %v13 = vld [vmem:[%s12] sm:$0xff]
  %v14 = vlaneseq
  %v15 = vand.u32 %v14, 127
  %vm16 = vcmp.lt.s32.totalorder %v15, 16
  %v17 = vsel %vm16, 0, %v13
  %18 = vrot.lane.b32.xlu0 %v17, 112
  %v19 = vpop.permute.xlu0 %18
  %v20 = vpack.i.bf16 %v19, 0.0
  %s21 = scalar_lea.vmem %s1, 12
  %v22 = vpack.c.bf16 0.0, %v20
  %23 = vst [vmem:[%s21] sm:$0xf] %v22
  %s24 = scalar_lea.vmem %s0, 8
  %v25 = vld [vmem:[%s24] sm:$0xff]
  %v26 = vlaneseq
  %v27 = vand.u32 %v26, 127
  %vm28 = vcmp.lt.s32.totalorder %v27, 16
  %v29 = vsel %vm28, 0, %v25
  %30 = vrot.lane.b32.xlu0 %v29, 112
  %v31 = vpop.permute.xlu0 %30
  %v32 = vpack.i.bf16 %v31, 0.0
  %s33 = scalar_lea.vmem %s1, 4
  %v34 = vpack.c.bf16 0.0, %v32
  %35 = vst [vmem:[%s33] sm:$0xf] %v34
  %s36 = scalar_lea.vmem %s0, 32
  %v37 = vld [vmem:[%s36] sm:$0xff]
  %v38 = vlaneseq
  %v39 = vand.u32 %v38, 127
  %vm40 = vcmp.lt.s32.totalorder %v39, 16
  %v41 = vsel %vm40, 0, %v37
  %42 = vrot.lane.b32.xlu0 %v41, 112
  %v43 = vpop.permute.xlu0 %42
  %v44 = vpack.i.bf16 %v43, 0.0
  %s45 = scalar_lea.vmem %s1, 16
  %v46 = vpack.c.bf16 0.0, %v44
  %47 = vst [vmem:[%s45] sm:$0xf] %v46
  %s48 = scalar_lea.vmem %s0, 16
  %v49 = vld [vmem:[%s48] sm:$0xff]
  %v50 = vlaneseq
  %v51 = vand.u32 %v50, 127
  %vm52 = vcmp.lt.s32.totalorder %v51, 16
  %v53 = vsel %vm52, 0, %v49
  %54 = vrot.lane.b32.xlu0 %v53, 112
  %v55 = vpop.permute.xlu0 %54
  %v56 = vpack.i.bf16 %v55, 0.0
  %s57 = scalar_lea.vmem %s1, 8
  %v58 = vpack.c.bf16 0.0, %v56
  %59 = vst [vmem:[%s57] sm:$0xf] %v58
  %s60 = scalar_lea.vmem %s0, 40
  %v61 = vld [vmem:[%s60] sm:$0xff]
  %v62 = vlaneseq
  %v63 = vand.u32 %v62, 127
  %vm64 = vcmp.lt.s32.totalorder %v63, 16
  %v65 = vsel %vm64, 0, %v61
  %66 = vrot.lane.b32.xlu0 %v65, 112
  %v67 = vpop.permute.xlu0 %66
  %v68 = vpack.i.bf16 %v67, 0.0
  %s69 = scalar_lea.vmem %s1, 20
  %v70 = vpack.c.bf16 0.0, %v68
  %71 = vst [vmem:[%s69] sm:$0xf] %v70

// kernel: split.18
$region0: #{split.18}
  #allocation0 [shape = 'u32[2048]{0}', space=vmem, size = 0x2000, scoped, tag = 'scoped memory for split.18']
  #allocation1 [shape = 'u32[2048]{0}', space=vmem, size = 0x2000, scoped, tag = 'scoped memory for split.18']
  #allocation2 [shape = 'u32[2048]{0}', space=vmem, size = 0x2000, scoped, tag = 'scoped memory for split.18']
  #allocation3 [shape = 'u32[2048]{0}', space=vmem, size = 0x2000, scoped, tag = 'scoped memory for split.18']
  #allocation4 [shape = 'u32[2048]{0}', space=vmem, size = 0x2000, scoped, tag = 'scoped memory for split.18']
  #allocation5 [shape = 's32[1]{0}', space=sflag, size = 0x4, scoped, tag = 'scoped memory for split.18']
  %s0 = inlined_call_operand.vmem [shape: f32[2,8,48], index: 0, kind: input, shape index: {}]
  %s1 = inlined_call_operand.vmem [shape: bf16[2,8,16], index: 1, kind: output, shape index: {}]
  %v2 = vld [vmem:[%s0] sm:$0xff]
  %v3 = vlaneseq
  %v4 = vand.u32 %v3, 127
  %vm5 = vcmp.lt.s32.totalorder %v4, 32
  %v6 = vsel %vm5, 0, %v2
  %7 = vrot.lane.b32.xlu0 %v6, 96
  %v8 = vpop.permute.xlu0 %7
  %v9 = vpack.i.bf16 %v8, 0.0
  %v10 = vpack.c.bf16 0.0, %v9
  %11 = vst [vmem:[%s1] sm:$0xf] %v10
  %s12 = scalar_lea.vmem %s0, 8
  %v13 = vld [vmem:[%s12] sm:$0xff]
  %v14 = vlaneseq
  %v15 = vand.u32 %v14, 127
  %vm16 = vcmp.lt.s32.totalorder %v15, 32
  %v17 = vsel %vm16, 0, %v13
  %18 = vrot.lane.b32.xlu0 %v17, 96
  %v19 = vpop.permute.xlu0 %18
  %v20 = vpack.i.bf16 %v19, 0.0
  %s21 = scalar_lea.vmem %s1, 4
  %v22 = vpack.c.bf16 0.0, %v20
  %23 = vst [vmem:[%s21] sm:$0xf] %v22

// kernel: gv_graph_transformer_block.4
$region0: #{gv_graph_transformer_block.4}
  #allocation0 [shape = 'u32[]', space=smem, size = 0x4, offset = 0x4, fixed_abs, tag = 'smem constant byte address 0x4 - core index']
  #allocation1 [shape = 'u32[144,128]{1,0:T(1,128)}', space=vmem, size = 0x12000, scoped, tag = 'internal scratch']
  %s0 = inlined_call_operand.vmem [shape: f32[16,16], index: 0, kind: input, shape index: {}]
  %s1 = inlined_call_operand.vmem [shape: f32[16,24], index: 1, kind: input, shape index: {}]
  %s2 = inlined_call_operand.vmem [shape: f32[1,16], index: 2, kind: input, shape index: {}]
  %s3 = inlined_call_operand.vmem [shape: f32[1,16], index: 3, kind: input, shape index: {}]
  %s4 = inlined_call_operand.vmem [shape: f32[1,24], index: 4, kind: input, shape index: {}]
  %s5 = inlined_call_operand.vmem [shape: f32[1,24], index: 5, kind: input, shape index: {}]
  %s6 = inlined_call_operand.vmem [shape: f32[16,16], index: 6, kind: output, shape index: {0}]
  %s7 = inlined_call_operand.vmem [shape: f32[16,24], index: 7, kind: output, shape index: {1}]
  %8 = xla_tuple %s6, %s7
  %s9 = sld [smem:[#allocation0]]
  $region42: #{gv_graph_transformer_block.4} parent=0
    _
  %s11 = ssub.s32 1, %s9
  %s12 = scalar_select 0, %s11, %s9
  // Predicated region
  $region2: #{gv_graph_transformer_block.4} parent=0 // pred_check
    _
  $region3: #{gv_graph_transformer_block.4} parent=0 // pred_check_branch
    %14 = sbr.rel (0) target = $region5
  $region4: #{gv_graph_transformer_block.4} parent=0 // pred_region
    _
  $region5: #{gv_graph_transformer_block.4} parent=0 // pred_fallthru
    _
  // Predicated region
  $region6: #{gv_graph_transformer_block.4} parent=0 // pred_check
    _
  $region7: #{gv_graph_transformer_block.4} parent=0 // pred_check_branch
    %16 = sbr.rel (0) target = $region9
  $region8: #{gv_graph_transformer_block.4} parent=0 // pred_region
    _
  $region9: #{gv_graph_transformer_block.4} parent=0 // pred_fallthru
    _
  // Predicated region
  $region10: #{gv_graph_transformer_block.4} parent=0 // pred_check
    _
  $region11: #{gv_graph_transformer_block.4} parent=0 // pred_check_branch
    %18 = sbr.rel (0) target = $region13
  $region12: #{gv_graph_transformer_block.4} parent=0 // pred_region
    _
  $region13: #{gv_graph_transformer_block.4} parent=0 // pred_fallthru
    _
  // Predicated region
  $region14: #{gv_graph_transformer_block.4} parent=0 // pred_check
    _
  $region15: #{gv_graph_transformer_block.4} parent=0 // pred_check_branch
    %20 = sbr.rel (0) target = $region17
  $region16: #{gv_graph_transformer_block.4} parent=0 // pred_region
    _
  $region17: #{gv_graph_transformer_block.4} parent=0 // pred_fallthru
    _
  // Predicated region
  $region18: #{gv_graph_transformer_block.4} parent=0 // pred_check
    _
  $region19: #{gv_graph_transformer_block.4} parent=0 // pred_check_branch
    %22 = sbr.rel (0) target = $region21
  $region20: #{gv_graph_transformer_block.4} parent=0 // pred_region
    _
  $region21: #{gv_graph_transformer_block.4} parent=0 // pred_fallthru
    _
  // Predicated region
  $region22: #{gv_graph_transformer_block.4} parent=0 // pred_check
    _
  $region23: #{gv_graph_transformer_block.4} parent=0 // pred_check_branch
    %24 = sbr.rel (0) target = $region25
  $region24: #{gv_graph_transformer_block.4} parent=0 // pred_region
    _
  $region25: #{gv_graph_transformer_block.4} parent=0 // pred_fallthru
    _
  %v25 = vld [vmem:[%s0] sm:$0xff]
  %v26 = vld [vmem:[%s0 + $0x8] sm:$0xff]
  %vm27 = vcmask 130048
  %v28 = vsel %vm27, %v25, 0.0
  %29 = vadd.xlane.f32.xlu0 %v28
  %v30 = vpop.xlane.xlu0 %29
  %v31 = vsel %vm27, %v26, 0.0
  %32 = vadd.xlane.f32.xlu0 %v31
  %v33 = vpop.xlane.xlu0 %32
  %v34 = vrcp.pop 16.0
  %v35 = vmul.f32 %v30, %v34
  %v36 = vmul.f32 %v33, %v34
  %v37 = vsub.f32 %v25, %v35
  %v38 = vsub.f32 %v26, %v36
  %v39 = vmul.f32 %v37, %v37
  %v40 = vmul.f32 %v38, %v38
  %v41 = vsel %vm27, %v39, 0.0
  %42 = vadd.xlane.f32.xlu0 %v41
  %v43 = vpop.xlane.xlu0 %42
  %v44 = vsel %vm27, %v40, 0.0
  %45 = vadd.xlane.f32.xlu0 %v44
  %v46 = vpop.xlane.xlu0 %45
  %v47 = vmul.f32 %v43, %v34
  %v48 = vmul.f32 %v46, %v34
  %v49 = vadd.f32 %v47, 1e-05
  %v50 = vadd.f32 %v48, 1e-05
  %v51 = vrsqrt.pop %v49
  %v52 = vrsqrt.pop %v50
  %v53 = vmul.f32 %v37, %v51
  %v54 = vmul.f32 %v38, %v52
  %v55 = vld [vmem:[%s2] sm:$0x1]
  %v57 = vlaneseq
  %v58 = vshrl.u32 %v57, 7
  %v59 = vsub.s32 0, %v58
  %v60 = vrot.slane %v55, %v59
  %v62 = vmul.f32 %v53, %v60
  %v63 = vmul.f32 %v54, %v60
  %v64 = vld [vmem:[%s3] sm:$0x1]
  %v66 = vlaneseq
  %v67 = vshrl.u32 %v66, 7
  %v68 = vsub.s32 0, %v67
  %v69 = vrot.slane %v64, %v68
  %v71 = vadd.f32 %v62, %v69
  %v72 = vadd.f32 %v63, %v69
  %73 = vst.msk [vmem:[%s6] sm:$0xff] %vm27, %v71
  %74 = vst.msk [vmem:[%s6 + $0x8] sm:$0xff] %vm27, %v72
  %v75 = vld [vmem:[%s1] sm:$0xff]
  %v76 = vld [vmem:[%s1 + $0x8] sm:$0xff]
  %vm77 = vcmp.ne.f32.partialorder %v75, 0.0
  %vm78 = vcmp.ne.f32.partialorder %v76, 0.0
  %v79 = vsel %vm77, 1, 0
  %v80 = vsel %vm78, 1, 0
  %v81 = vcvt.s32.f32 %v79
  %v82 = vcvt.s32.f32 %v80
  %v83 = vmul.f32 %v75, %v75
  %v84 = vmul.f32 %v76, %v76
  %vm85 = vcmask 195584
  %v86 = vsel %vm85, %v83, 0.0
  %87 = vadd.xlane.f32.xlu0 %v86
  %v88 = vpop.xlane.xlu0 %87
  %v89 = vsel %vm85, %v84, 0.0
  %90 = vadd.xlane.f32.xlu0 %v89
  %v91 = vpop.xlane.xlu0 %90
  %v92 = vadd.f32 %v88, 1e-08
  %v93 = vadd.f32 %v91, 1e-08
  %v94 = vrcp.pop 8.0
  %v95 = vmul.f32 %v92, %v94
  %v96 = vmul.f32 %v93, %v94
  %v97 = vrsqrt.pop %v95
  %v98 = vrsqrt.pop %v96
  %v99 = vmul.f32 %v75, %v97
  %v100 = vmul.f32 %v76, %v98
  %v101 = vmul.f32 %v99, %v81
  %v102 = vmul.f32 %v100, %v82
  %v103 = vld [vmem:[%s4] sm:$0x1]
  %v105 = vlaneseq
  %v106 = vshrl.u32 %v105, 7
  %v107 = vsub.s32 0, %v106
  %v108 = vrot.slane %v103, %v107
  %v110 = vmul.f32 %v101, %v108
  %v111 = vmul.f32 %v102, %v108
  %v112 = vld [vmem:[%s5] sm:$0x1]
  %v114 = vlaneseq
  %v115 = vshrl.u32 %v114, 7
  %v116 = vsub.s32 0, %v115
  %v117 = vrot.slane %v112, %v116
  %v119 = vadd.f32 %v110, %v117
  %v120 = vadd.f32 %v111, %v117
  %121 = vst.msk [vmem:[%s7] sm:$0xff] %vm85, %v119
  %122 = vst.msk [vmem:[%s7 + $0x8] sm:$0xff] %vm85, %v120
  // Predicated region
  $region26: #{gv_graph_transformer_block.4} parent=0 // pred_check
    _
  $region27: #{gv_graph_transformer_block.4} parent=0 // pred_check_branch
    %124 = sbr.rel (0) target = $region29
  $region28: #{gv_graph_transformer_block.4} parent=0 // pred_region
    _
  $region29: #{gv_graph_transformer_block.4} parent=0 // pred_fallthru
    _
  // Predicated region
  $region30: #{gv_graph_transformer_block.4} parent=0 // pred_check
    _
  $region31: #{gv_graph_transformer_block.4} parent=0 // pred_check_branch
    %126 = sbr.rel (0) target = $region33
  $region32: #{gv_graph_transformer_block.4} parent=0 // pred_region
    _
  $region33: #{gv_graph_transformer_block.4} parent=0 // pred_fallthru
    _
  // Predicated region
  $region34: #{gv_graph_transformer_block.4} parent=0 // pred_check
    _
  $region35: #{gv_graph_transformer_block.4} parent=0 // pred_check_branch
    %128 = sbr.rel (0) target = $region37
  $region36: #{gv_graph_transformer_block.4} parent=0 // pred_region
    _
  $region37: #{gv_graph_transformer_block.4} parent=0 // pred_fallthru
    _
  // Predicated region
  $region38: #{gv_graph_transformer_block.4} parent=0 // pred_check
    _
  $region39: #{gv_graph_transformer_block.4} parent=0 // pred_check_branch
    %130 = sbr.rel (0) target = $region41
  $region40: #{gv_graph_transformer_block.4} parent=0 // pred_region
    _
  $region41: #{gv_graph_transformer_block.4} parent=0 // pred_fallthru
    _

// kernel: gv_graph_transformer_block.3
$region0: #{gv_graph_transformer_block.3}
  #allocation0 [shape = 'u32[]', space=smem, size = 0x4, offset = 0x4, fixed_abs, tag = 'smem constant byte address 0x4 - core index']
  #allocation1 [shape = 'u32[144,128]{1,0:T(1,128)}', space=vmem, size = 0x12000, scoped, tag = 'internal scratch']
  %s0 = inlined_call_operand.vmem [shape: f32[2,8,16], index: 0, kind: input, shape index: {}]
  %s1 = inlined_call_operand.vmem [shape: f32[2,8,24], index: 1, kind: input, shape index: {}]
  %s2 = inlined_call_operand.vmem [shape: f32[2,16,8], index: 2, kind: input, shape index: {}]
  %s3 = inlined_call_operand.vmem [shape: f32[2,24,8], index: 3, kind: input, shape index: {}]
  %s4 = inlined_call_operand.vmem [shape: bf16[2,8,16,8], index: 4, kind: input, shape index: {}]
  %s5 = inlined_call_operand.vmem [shape: bf16[2,8,24,8], index: 5, kind: input, shape index: {}]
  %s6 = inlined_call_operand.vmem [shape: bf16[2,8,16], index: 6, kind: input, shape index: {}]
  %s7 = inlined_call_operand.vmem [shape: bf16[2,8,24], index: 7, kind: input, shape index: {}]
  %s8 = inlined_call_operand.vmem [shape: f32[2,1,8], index: 8, kind: input, shape index: {}]
  %s9 = inlined_call_operand.vmem [shape: f32[2,8,40], index: 9, kind: output, shape index: {}]
  %s10 = sld [smem:[#allocation0]]
  $region69: #{gv_graph_transformer_block.3} parent=0
    _
  %s12 = ssub.s32 1, %s10
  %s13 = scalar_select 0, %s12, %s10
  loop: start=0, step=1, limit=4
  $region2: #{gv_graph_transformer_block.3} parent=0 // loop_pre_header
    _
  $region3: #{gv_graph_transformer_block.3} parent=0 // loop_header
    %s15 = sphi 0, %s19
    %p16 = scmp.ge.s32.totalorder %s15, 4
    %s22 = sphi 0, %s34
    %s23 = sphi 0, %s30
    %s24 = sphi 0, %s22
    %s25 = sphi 0, %s23
    %s26 = sphi 0, %s24
    %s27 = sphi 0, %s25
    %s39 = sphi 0, %s41
    %s42 = sphi 0, %s39
    %s43 = sphi 0, %s42
    %s59 = sphi 0, %s43
    %s67 = sphi 0, %s69
    %s70 = sphi 0, %s67
    %s71 = sphi 0, %s70
    %s87 = sphi 0, %s71
    %s93 = sphi 0, %s95
    %s96 = sphi 0, %s93
    %s97 = sphi 0, %s96
    %s113 = sphi 0, %s97
    %s119 = sphi 0, %s121
    %s122 = sphi 0, %s119
    %s123 = sphi 0, %s122
    %s139 = sphi 0, %s123
    %s147 = sphi 0, %s149
    %s150 = sphi 0, %s147
    %s151 = sphi 0, %s150
    %s167 = sphi 0, %s151
    %s175 = sphi 0, %s177
    %s178 = sphi 0, %s175
    %s179 = sphi 0, %s178
    %s195 = sphi 0, %s179
    %s201 = sphi 0, %s203
    %s204 = sphi 0, %s201
    %s205 = sphi 0, %s204
    %s221 = sphi 0, %s205
    %s227 = sphi 0, %s229
    %s230 = sphi 0, %s227
    %s231 = sphi 0, %s230
    %s247 = sphi 0, %s231
    %s253 = sphi 0, %s255
    %s256 = sphi 0, %s253
    %s257 = sphi 0, %s256
    %s273 = sphi 0, %s257
    %s281 = sphi 0, %s283
    %s284 = sphi 0, %s281
    %s285 = sphi 0, %s284
    %s301 = sphi 0, %s285
  $region4: #{gv_graph_transformer_block.3} parent=0 // loop_header_branch
    %18 = sbr.rel (%p16) target = $region8
  $region5: #{gv_graph_transformer_block.3} parent=0 // loop_body
    %s20 = ssub.s32 %s15, 1
    %s21 = ssub.s32 %s15, 2
    %s28 = sadd.s32 1, %s23
    %p29 = scmp.ge.s32.totalorder %s28, 1
    %s30 = scalar_select %p29, 0, %s28
    %s31 = sadd.s32 1, %s22
    %s32 = scalar_select %p29, %s31, %s22
    %p33 = scmp.ge.s32.totalorder %s32, 2
    %s34 = scalar_select %p33, 0, %s32
    %s35 = ssub.s32 %s22, %s34
    %s36 = ssub.s32 %s23, %s30
    %s37 = sor.u32 %s35, %s36
    %p38 = scmp.eq.s32.totalorder %s37, 0
    %s40 = sadd.s32 %s39, 1
    %s41 = scalar_select %p38, %s39, %s40
    %p44 = pneg %p38
    %p45 = scmp.eq.s32.totalorder %s15, 1
    %p46 = por %p44, %p45
    %p47 = scmp.ne.s32.totalorder %s39, %s42
    %p48 = scmp.eq.s32.totalorder %s15, 0
    %p49 = por %p47, %p48
    %p50 = scmp.ne.s32.totalorder %s39, %s42
    %p51 = scmp.eq.s32.totalorder %s20, 1
    %p52 = por %p50, %p51
    %p53 = scmp.ne.s32.totalorder %s42, %s43
    %p54 = scmp.eq.s32.totalorder %s20, 0
    %p55 = por %p53, %p54
    %p56 = scmp.ne.s32.totalorder %s42, %s43
    %p57 = scmp.eq.s32.totalorder %s21, 1
    %p58 = por %p56, %p57
    %p60 = scmp.ne.s32.totalorder %s43, %s59
    %p61 = scmp.eq.s32.totalorder %s21, 0
    %p62 = por %p60, %p61
    %s63 = ssub.s32 %s22, %s34
    %s64 = ssub.s32 %s23, %s30
    %s65 = sor.u32 %s63, %s64
    %p66 = scmp.eq.s32.totalorder %s65, 0
    %s68 = sadd.s32 %s67, 1
    %s69 = scalar_select %p66, %s67, %s68
    %p72 = pneg %p66
    %p73 = scmp.eq.s32.totalorder %s15, 1
    %p74 = por %p72, %p73
    %p75 = scmp.ne.s32.totalorder %s67, %s70
    %p76 = scmp.eq.s32.totalorder %s15, 0
    %p77 = por %p75, %p76
    %p78 = scmp.ne.s32.totalorder %s67, %s70
    %p79 = scmp.eq.s32.totalorder %s20, 1
    %p80 = por %p78, %p79
    %p81 = scmp.ne.s32.totalorder %s70, %s71
    %p82 = scmp.eq.s32.totalorder %s20, 0
    %p83 = por %p81, %p82
    %p84 = scmp.ne.s32.totalorder %s70, %s71
    %p85 = scmp.eq.s32.totalorder %s21, 1
    %p86 = por %p84, %p85
    %p88 = scmp.ne.s32.totalorder %s71, %s87
    %p89 = scmp.eq.s32.totalorder %s21, 0
    %p90 = por %p88, %p89
    %s91 = ssub.s32 %s22, %s34
    %p92 = scmp.eq.s32.totalorder %s91, 0
    %s94 = sadd.s32 %s93, 1
    %s95 = scalar_select %p92, %s93, %s94
    %p98 = pneg %p92
    %p99 = scmp.eq.s32.totalorder %s15, 1
    %p100 = por %p98, %p99
    %p101 = scmp.ne.s32.totalorder %s93, %s96
    %p102 = scmp.eq.s32.totalorder %s15, 0
    %p103 = por %p101, %p102
    %p104 = scmp.ne.s32.totalorder %s93, %s96
    %p105 = scmp.eq.s32.totalorder %s20, 1
    %p106 = por %p104, %p105
    %p107 = scmp.ne.s32.totalorder %s96, %s97
    %p108 = scmp.eq.s32.totalorder %s20, 0
    %p109 = por %p107, %p108
    %p110 = scmp.ne.s32.totalorder %s96, %s97
    %p111 = scmp.eq.s32.totalorder %s21, 1
    %p112 = por %p110, %p111
    %p114 = scmp.ne.s32.totalorder %s97, %s113
    %p115 = scmp.eq.s32.totalorder %s21, 0
    %p116 = por %p114, %p115
    %s117 = ssub.s32 %s22, %s34
    %p118 = scmp.eq.s32.totalorder %s117, 0
    %s120 = sadd.s32 %s119, 1
    %s121 = scalar_select %p118, %s119, %s120
    %p124 = pneg %p118
    %p125 = scmp.eq.s32.totalorder %s15, 1
    %p126 = por %p124, %p125
    %p127 = scmp.ne.s32.totalorder %s119, %s122
    %p128 = scmp.eq.s32.totalorder %s15, 0
    %p129 = por %p127, %p128
    %p130 = scmp.ne.s32.totalorder %s119, %s122
    %p131 = scmp.eq.s32.totalorder %s20, 1
    %p132 = por %p130, %p131
    %p133 = scmp.ne.s32.totalorder %s122, %s123
    %p134 = scmp.eq.s32.totalorder %s20, 0
    %p135 = por %p133, %p134
    %p136 = scmp.ne.s32.totalorder %s122, %s123
    %p137 = scmp.eq.s32.totalorder %s21, 1
    %p138 = por %p136, %p137
    %p140 = scmp.ne.s32.totalorder %s123, %s139
    %p141 = scmp.eq.s32.totalorder %s21, 0
    %p142 = por %p140, %p141
    %s143 = ssub.s32 %s22, %s34
    %s144 = ssub.s32 %s23, %s30
    %s145 = sor.u32 %s143, %s144
    %p146 = scmp.eq.s32.totalorder %s145, 0
    %s148 = sadd.s32 %s147, 1
    %s149 = scalar_select %p146, %s147, %s148
    %p152 = pneg %p146
    %p153 = scmp.eq.s32.totalorder %s15, 1
    %p154 = por %p152, %p153
    %p155 = scmp.ne.s32.totalorder %s147, %s150
    %p156 = scmp.eq.s32.totalorder %s15, 0
    %p157 = por %p155, %p156
    %p158 = scmp.ne.s32.totalorder %s147, %s150
    %p159 = scmp.eq.s32.totalorder %s20, 1
    %p160 = por %p158, %p159
    %p161 = scmp.ne.s32.totalorder %s150, %s151
    %p162 = scmp.eq.s32.totalorder %s20, 0
    %p163 = por %p161, %p162
    %p164 = scmp.ne.s32.totalorder %s150, %s151
    %p165 = scmp.eq.s32.totalorder %s21, 1
    %p166 = por %p164, %p165
    %p168 = scmp.ne.s32.totalorder %s151, %s167
    %p169 = scmp.eq.s32.totalorder %s21, 0
    %p170 = por %p168, %p169
    %s171 = ssub.s32 %s22, %s34
    %s172 = ssub.s32 %s23, %s30
    %s173 = sor.u32 %s171, %s172
    %p174 = scmp.eq.s32.totalorder %s173, 0
    %s176 = sadd.s32 %s175, 1
    %s177 = scalar_select %p174, %s175, %s176
    %p180 = pneg %p174
    %p181 = scmp.eq.s32.totalorder %s15, 1
    %p182 = por %p180, %p181
    %p183 = scmp.ne.s32.totalorder %s175, %s178
    %p184 = scmp.eq.s32.totalorder %s15, 0
    %p185 = por %p183, %p184
    %p186 = scmp.ne.s32.totalorder %s175, %s178
    %p187 = scmp.eq.s32.totalorder %s20, 1
    %p188 = por %p186, %p187
    %p189 = scmp.ne.s32.totalorder %s178, %s179
    %p190 = scmp.eq.s32.totalorder %s20, 0
    %p191 = por %p189, %p190
    %p192 = scmp.ne.s32.totalorder %s178, %s179
    %p193 = scmp.eq.s32.totalorder %s21, 1
    %p194 = por %p192, %p193
    %p196 = scmp.ne.s32.totalorder %s179, %s195
    %p197 = scmp.eq.s32.totalorder %s21, 0
    %p198 = por %p196, %p197
    %s199 = ssub.s32 %s22, %s34
    %p200 = scmp.eq.s32.totalorder %s199, 0
    %s202 = sadd.s32 %s201, 1
    %s203 = scalar_select %p200, %s201, %s202
    %p206 = pneg %p200
    %p207 = scmp.eq.s32.totalorder %s15, 1
    %p208 = por %p206, %p207
    %p209 = scmp.ne.s32.totalorder %s201, %s204
    %p210 = scmp.eq.s32.totalorder %s15, 0
    %p211 = por %p209, %p210
    %p212 = scmp.ne.s32.totalorder %s201, %s204
    %p213 = scmp.eq.s32.totalorder %s20, 1
    %p214 = por %p212, %p213
    %p215 = scmp.ne.s32.totalorder %s204, %s205
    %p216 = scmp.eq.s32.totalorder %s20, 0
    %p217 = por %p215, %p216
    %p218 = scmp.ne.s32.totalorder %s204, %s205
    %p219 = scmp.eq.s32.totalorder %s21, 1
    %p220 = por %p218, %p219
    %p222 = scmp.ne.s32.totalorder %s205, %s221
    %p223 = scmp.eq.s32.totalorder %s21, 0
    %p224 = por %p222, %p223
    %s225 = ssub.s32 %s22, %s34
    %p226 = scmp.eq.s32.totalorder %s225, 0
    %s228 = sadd.s32 %s227, 1
    %s229 = scalar_select %p226, %s227, %s228
    %p232 = pneg %p226
    %p233 = scmp.eq.s32.totalorder %s15, 1
    %p234 = por %p232, %p233
    %p235 = scmp.ne.s32.totalorder %s227, %s230
    %p236 = scmp.eq.s32.totalorder %s15, 0
    %p237 = por %p235, %p236
    %p238 = scmp.ne.s32.totalorder %s227, %s230
    %p239 = scmp.eq.s32.totalorder %s20, 1
    %p240 = por %p238, %p239
    %p241 = scmp.ne.s32.totalorder %s230, %s231
    %p242 = scmp.eq.s32.totalorder %s20, 0
    %p243 = por %p241, %p242
    %p244 = scmp.ne.s32.totalorder %s230, %s231
    %p245 = scmp.eq.s32.totalorder %s21, 1
    %p246 = por %p244, %p245
    %p248 = scmp.ne.s32.totalorder %s231, %s247
    %p249 = scmp.eq.s32.totalorder %s21, 0
    %p250 = por %p248, %p249
    %s251 = ssub.s32 %s22, %s34
    %p252 = scmp.eq.s32.totalorder %s251, 0
    %s254 = sadd.s32 %s253, 1
    %s255 = scalar_select %p252, %s253, %s254
    %p258 = pneg %p252
    %p259 = scmp.eq.s32.totalorder %s15, 1
    %p260 = por %p258, %p259
    %p261 = scmp.ne.s32.totalorder %s253, %s256
    %p262 = scmp.eq.s32.totalorder %s15, 0
    %p263 = por %p261, %p262
    %p264 = scmp.ne.s32.totalorder %s253, %s256
    %p265 = scmp.eq.s32.totalorder %s20, 1
    %p266 = por %p264, %p265
    %p267 = scmp.ne.s32.totalorder %s256, %s257
    %p268 = scmp.eq.s32.totalorder %s20, 0
    %p269 = por %p267, %p268
    %p270 = scmp.ne.s32.totalorder %s256, %s257
    %p271 = scmp.eq.s32.totalorder %s21, 1
    %p272 = por %p270, %p271
    %p274 = scmp.ne.s32.totalorder %s257, %s273
    %p275 = scmp.eq.s32.totalorder %s21, 0
    %p276 = por %p274, %p275
    %s277 = ssub.s32 %s22, %s34
    %s278 = ssub.s32 %s23, %s30
    %s279 = sor.u32 %s277, %s278
    %p280 = scmp.eq.s32.totalorder %s279, 0
    %s282 = sadd.s32 %s281, 1
    %s283 = scalar_select %p280, %s281, %s282
    %p286 = pneg %p280
    %p287 = scmp.eq.s32.totalorder %s15, 1
    %p288 = por %p286, %p287
    %p289 = scmp.ne.s32.totalorder %s281, %s284
    %p290 = scmp.eq.s32.totalorder %s15, 0
    %p291 = por %p289, %p290
    %p292 = scmp.ne.s32.totalorder %s281, %s284
    %p293 = scmp.eq.s32.totalorder %s20, 1
    %p294 = por %p292, %p293
    %p295 = scmp.ne.s32.totalorder %s284, %s285
    %p296 = scmp.eq.s32.totalorder %s20, 0
    %p297 = por %p295, %p296
    %p298 = scmp.ne.s32.totalorder %s284, %s285
    %p299 = scmp.eq.s32.totalorder %s21, 1
    %p300 = por %p298, %p299
    %p302 = scmp.ne.s32.totalorder %s285, %s301
    %p303 = scmp.eq.s32.totalorder %s21, 0
    %p304 = por %p302, %p303
    %p305 = scmp.le.s32.totalorder 1, %s15
    %p306 = scmp.lt.s32.totalorder %s15, 3
    %p307 = pnand %p305, %p306
    %p308 = pneg %p307
    // Predicated region
    $region9: #{gv_graph_transformer_block.3} parent=5 // pred_check
      _
    $region10: #{gv_graph_transformer_block.3} parent=5 // pred_check_branch
      %310 = sbr.rel (%p307) target = $region12
    $region11: #{gv_graph_transformer_block.3} parent=5 // pred_region
      %s311 = ssub.s32 %s15, 1
    $region12: #{gv_graph_transformer_block.3} parent=5 // pred_fallthru
      _
    %p312 = scmp.lt.s32.totalorder %s15, 2
    // Predicated region
    $region13: #{gv_graph_transformer_block.3} parent=5 // pred_check
      %p313 = pneg %p312
    $region14: #{gv_graph_transformer_block.3} parent=5 // pred_check_branch
      %315 = sbr.rel (%p313) target = $region16
    $region15: #{gv_graph_transformer_block.3} parent=5 // pred_region
      // Predicated region
      $region17: #{gv_graph_transformer_block.3} parent=15 // pred_check
        %p316 = pneg %p49
      $region18: #{gv_graph_transformer_block.3} parent=15 // pred_check_branch
        %318 = sbr.rel (%p316) target = $region20
      $region19: #{gv_graph_transformer_block.3} parent=15 // pred_region
        %p319 = scmp.lt.s32.totalorder %s22, 1
        %s320 = scalar_select %p319, %s22, 1
        %p321 = scmp.lt.s32.totalorder %s23, 0
        %s322 = scalar_select %p321, %s23, 0
        %s323 = sadd.s32 %s322, %s320
        %s324 = smul.addr %s323, 8
        %s325 = scalar_lea.vmem %s0, %s324
      $region20: #{gv_graph_transformer_block.3} parent=15 // pred_fallthru
        _
      // Predicated region
      $region21: #{gv_graph_transformer_block.3} parent=15 // pred_check
        %p326 = pneg %p77
      $region22: #{gv_graph_transformer_block.3} parent=15 // pred_check_branch
        %328 = sbr.rel (%p326) target = $region24
      $region23: #{gv_graph_transformer_block.3} parent=15 // pred_region
        %p329 = scmp.lt.s32.totalorder %s22, 1
        %s330 = scalar_select %p329, %s22, 1
        %p331 = scmp.lt.s32.totalorder %s23, 0
        %s332 = scalar_select %p331, %s23, 0
        %s333 = sadd.s32 %s332, %s330
        %s334 = smul.addr %s333, 8
        %s335 = scalar_lea.vmem %s1, %s334
      $region24: #{gv_graph_transformer_block.3} parent=15 // pred_fallthru
        _
      // Predicated region
      $region25: #{gv_graph_transformer_block.3} parent=15 // pred_check
        %p336 = pneg %p103
      $region26: #{gv_graph_transformer_block.3} parent=15 // pred_check_branch
        %338 = sbr.rel (%p336) target = $region28
      $region27: #{gv_graph_transformer_block.3} parent=15 // pred_region
        %p339 = scmp.lt.s32.totalorder %s22, 1
        %s340 = scalar_select %p339, %s22, 1
        %s341 = smul.addr %s340, 2
        %s342 = smul.addr %s341, 8
        %s343 = scalar_lea.vmem %s2, %s342
      $region28: #{gv_graph_transformer_block.3} parent=15 // pred_fallthru
        _
      // Predicated region
      $region29: #{gv_graph_transformer_block.3} parent=15 // pred_check
        %p344 = pneg %p129
      $region30: #{gv_graph_transformer_block.3} parent=15 // pred_check_branch
        %346 = sbr.rel (%p344) target = $region32
      $region31: #{gv_graph_transformer_block.3} parent=15 // pred_region
        %p347 = scmp.lt.s32.totalorder %s22, 1
        %s348 = scalar_select %p347, %s22, 1
        %s349 = smul.addr %s348, 3
        %s350 = smul.addr %s349, 8
        %s351 = scalar_lea.vmem %s3, %s350
      $region32: #{gv_graph_transformer_block.3} parent=15 // pred_fallthru
        _
      // Predicated region
      $region33: #{gv_graph_transformer_block.3} parent=15 // pred_check
        %p352 = pneg %p157
      $region34: #{gv_graph_transformer_block.3} parent=15 // pred_check_branch
        %354 = sbr.rel (%p352) target = $region36
      $region35: #{gv_graph_transformer_block.3} parent=15 // pred_region
        %s355 = smul.u32 8, %s23
        %p356 = scmp.lt.s32.totalorder %s22, 1
        %s357 = scalar_select %p356, %s22, 1
        %p358 = scmp.lt.s32.totalorder %s355, 7
        %s359 = scalar_select %p358, %s355, 7
        %s360 = smul.addr %s359, 2
        %s361 = smul.addr %s357, 16
        %s362 = sadd.s32 %s360, %s361
        %s363 = smul.addr %s362, 4
        %s364 = scalar_lea.vmem %s4, %s363
        %s365 = smul.u32 8, %s23
      $region36: #{gv_graph_transformer_block.3} parent=15 // pred_fallthru
        _
      // Predicated region
      $region37: #{gv_graph_transformer_block.3} parent=15 // pred_check
        %p366 = pneg %p185
      $region38: #{gv_graph_transformer_block.3} parent=15 // pred_check_branch
        %368 = sbr.rel (%p366) target = $region40
      $region39: #{gv_graph_transformer_block.3} parent=15 // pred_region
        %s369 = smul.u32 8, %s23
        %p370 = scmp.lt.s32.totalorder %s22, 1
        %s371 = scalar_select %p370, %s22, 1
        %p372 = scmp.lt.s32.totalorder %s369, 7
        %s373 = scalar_select %p372, %s369, 7
        %s374 = smul.addr %s373, 3
        %s375 = smul.addr %s371, 24
        %s376 = sadd.s32 %s374, %s375
        %s377 = smul.addr %s376, 4
        %s378 = scalar_lea.vmem %s5, %s377
        %s379 = smul.u32 8, %s23
      $region40: #{gv_graph_transformer_block.3} parent=15 // pred_fallthru
        _
      // Predicated region
      $region41: #{gv_graph_transformer_block.3} parent=15 // pred_check
        %p380 = pneg %p211
      $region42: #{gv_graph_transformer_block.3} parent=15 // pred_check_branch
        %382 = sbr.rel (%p380) target = $region44
      $region43: #{gv_graph_transformer_block.3} parent=15 // pred_region
        %p383 = scmp.lt.s32.totalorder %s22, 1
        %s384 = scalar_select %p383, %s22, 1
        %s385 = smul.addr %s384, 4
        %s386 = scalar_lea.vmem %s6, %s385
      $region44: #{gv_graph_transformer_block.3} parent=15 // pred_fallthru
        _
      // Predicated region
      $region45: #{gv_graph_transformer_block.3} parent=15 // pred_check
        %p387 = pneg %p237
      $region46: #{gv_graph_transformer_block.3} parent=15 // pred_check_branch
        %389 = sbr.rel (%p387) target = $region48
      $region47: #{gv_graph_transformer_block.3} parent=15 // pred_region
        %p390 = scmp.lt.s32.totalorder %s22, 1
        %s391 = scalar_select %p390, %s22, 1
        %s392 = smul.addr %s391, 4
        %s393 = scalar_lea.vmem %s7, %s392
      $region48: #{gv_graph_transformer_block.3} parent=15 // pred_fallthru
        _
      // Predicated region
      $region49: #{gv_graph_transformer_block.3} parent=15 // pred_check
        %p394 = pneg %p263
      $region50: #{gv_graph_transformer_block.3} parent=15 // pred_check_branch
        %396 = sbr.rel (%p394) target = $region52
      $region51: #{gv_graph_transformer_block.3} parent=15 // pred_region
        %p397 = scmp.lt.s32.totalorder %s22, 1
        %s398 = scalar_select %p397, %s22, 1
        %s399 = scalar_lea.vmem %s8, %s398
      $region52: #{gv_graph_transformer_block.3} parent=15 // pred_fallthru
        _
    $region16: #{gv_graph_transformer_block.3} parent=5 // pred_fallthru
      _
    %p400 = scmp.le.s32.totalorder 1, %s15
    %p401 = scmp.lt.s32.totalorder %s15, 3
    %p402 = pnand %p400, %p401
    %p403 = pneg %p402
    // Predicated region
    $region53: #{gv_graph_transformer_block.3} parent=5 // pred_check
      _
    $region54: #{gv_graph_transformer_block.3} parent=5 // pred_check_branch
      %405 = sbr.rel (%p402) target = $region56
    $region55: #{gv_graph_transformer_block.3} parent=5 // pred_region
      %s406 = ssub.s32 %s15, 1
      %p407 = scmp.lt.s32.totalorder %s24, 1
      %s408 = scalar_select %p407, %s24, 1
      %p409 = scmp.lt.s32.totalorder %s25, 0
      %s410 = scalar_select %p409, %s25, 0
      %s411 = sadd.s32 %s410, %s408
      %s412 = smul.addr %s411, 8
      %s413 = scalar_lea.vmem %s0, %s412
      %p414 = pneg %p55
      %p415 = pneg %p52
      %p416 = scmp.lt.s32.totalorder %s24, 1
      %s417 = scalar_select %p416, %s24, 1
      %p418 = scmp.lt.s32.totalorder %s25, 0
      %s419 = scalar_select %p418, %s25, 0
      %s420 = sadd.s32 %s419, %s417
      %s421 = smul.addr %s420, 8
      %s422 = scalar_lea.vmem %s1, %s421
      %p423 = pneg %p83
      %p424 = pneg %p80
      %p425 = scmp.lt.s32.totalorder %s24, 1
      %s426 = scalar_select %p425, %s24, 1
      %s427 = smul.addr %s426, 2
      %s428 = smul.addr %s427, 8
      %s429 = scalar_lea.vmem %s2, %s428
      %p430 = pneg %p109
      %p431 = pneg %p106
      %p432 = scmp.lt.s32.totalorder %s24, 1
      %s433 = scalar_select %p432, %s24, 1
      %s434 = smul.addr %s433, 3
      %s435 = smul.addr %s434, 8
      %s436 = scalar_lea.vmem %s3, %s435
      %p437 = pneg %p135
      %p438 = pneg %p132
      %s439 = smul.u32 8, %s25
      %p440 = scmp.lt.s32.totalorder %s24, 1
      %s441 = scalar_select %p440, %s24, 1
      %p442 = scmp.lt.s32.totalorder %s439, 7
      %s443 = scalar_select %p442, %s439, 7
      %s444 = smul.addr %s443, 2
      %s445 = smul.addr %s441, 16
      %s446 = sadd.s32 %s444, %s445
      %s447 = smul.addr %s446, 4
      %s448 = scalar_lea.vmem %s4, %s447
      %p449 = pneg %p163
      %p450 = pneg %p160
      %s451 = smul.u32 8, %s25
      %p452 = scmp.lt.s32.totalorder %s24, 1
      %s453 = scalar_select %p452, %s24, 1
      %p454 = scmp.lt.s32.totalorder %s451, 7
      %s455 = scalar_select %p454, %s451, 7
      %s456 = smul.addr %s455, 3
      %s457 = smul.addr %s453, 24
      %s458 = sadd.s32 %s456, %s457
      %s459 = smul.addr %s458, 4
      %s460 = scalar_lea.vmem %s5, %s459
      %p461 = pneg %p191
      %p462 = pneg %p188
      %p463 = scmp.lt.s32.totalorder %s24, 1
      %s464 = scalar_select %p463, %s24, 1
      %s465 = smul.addr %s464, 4
      %s466 = scalar_lea.vmem %s6, %s465
      %p467 = pneg %p217
      %p468 = pneg %p214
      %p469 = scmp.lt.s32.totalorder %s24, 1
      %s470 = scalar_select %p469, %s24, 1
      %s471 = smul.addr %s470, 4
      %s472 = scalar_lea.vmem %s7, %s471
      %p473 = pneg %p243
      %p474 = pneg %p240
      %p475 = scmp.lt.s32.totalorder %s24, 1
      %s476 = scalar_select %p475, %s24, 1
      %s477 = scalar_lea.vmem %s8, %s476
      %p478 = pneg %p269
      %p479 = pneg %p266
      %p480 = pneg %p297
      %p481 = pneg %p294
      %p482 = scmp.lt.s32.totalorder %s24, 1
      %s483 = scalar_select %p482, %s24, 1
      %p484 = scmp.lt.s32.totalorder %s25, 0
      %s485 = scalar_select %p484, %s25, 0
      %s486 = sadd.s32 %s485, %s483
      %s487 = smul.addr %s486, 8
      %s488 = scalar_lea.vmem %s9, %s487
      %p489 = scmp.lt.s32.totalorder %s24, 1
      %s490 = scalar_select %p489, %s24, 1
      %p491 = scmp.lt.s32.totalorder %s25, 0
      %s492 = scalar_select %p491, %s25, 0
      %s493 = sadd.s32 %s492, %s490
      %s494 = smul.addr %s493, 8
      %s495 = scalar_lea.vmem %s0, %s494
      %p496 = scmp.lt.s32.totalorder %s24, 1
      %s497 = scalar_select %p496, %s24, 1
      %p498 = scmp.lt.s32.totalorder %s25, 0
      %s499 = scalar_select %p498, %s25, 0
      %s500 = sadd.s32 %s499, %s497
      %s501 = smul.addr %s500, 8
      %s502 = scalar_lea.vmem %s1, %s501
      %p503 = scmp.lt.s32.totalorder %s24, 1
      %s504 = scalar_select %p503, %s24, 1
      %s505 = smul.addr %s504, 2
      %s506 = smul.addr %s505, 8
      %s507 = scalar_lea.vmem %s2, %s506
      %p508 = scmp.lt.s32.totalorder %s24, 1
      %s509 = scalar_select %p508, %s24, 1
      %s510 = smul.addr %s509, 3
      %s511 = smul.addr %s510, 8
      %s512 = scalar_lea.vmem %s3, %s511
      %s513 = smul.u32 8, %s25
      %p514 = scmp.lt.s32.totalorder %s24, 1
      %s515 = scalar_select %p514, %s24, 1
      %p516 = scmp.lt.s32.totalorder %s513, 7
      %s517 = scalar_select %p516, %s513, 7
      %s518 = smul.addr %s517, 2
      %s519 = smul.addr %s515, 16
      %s520 = sadd.s32 %s518, %s519
      %s521 = smul.addr %s520, 4
      %s522 = scalar_lea.vmem %s4, %s521
      %s523 = smul.u32 8, %s25
      %s524 = smul.u32 8, %s25
      %p525 = scmp.lt.s32.totalorder %s24, 1
      %s526 = scalar_select %p525, %s24, 1
      %p527 = scmp.lt.s32.totalorder %s524, 7
      %s528 = scalar_select %p527, %s524, 7
      %s529 = smul.addr %s528, 3
      %s530 = smul.addr %s526, 24
      %s531 = sadd.s32 %s529, %s530
      %s532 = smul.addr %s531, 4
      %s533 = scalar_lea.vmem %s5, %s532
      %s534 = smul.u32 8, %s25
      %p535 = scmp.lt.s32.totalorder %s24, 1
      %s536 = scalar_select %p535, %s24, 1
      %s537 = smul.addr %s536, 4
      %s538 = scalar_lea.vmem %s6, %s537
      %p539 = scmp.lt.s32.totalorder %s24, 1
      %s540 = scalar_select %p539, %s24, 1
      %s541 = smul.addr %s540, 4
      %s542 = scalar_lea.vmem %s7, %s541
      %p543 = scmp.lt.s32.totalorder %s24, 1
      %s544 = scalar_select %p543, %s24, 1
      %s545 = scalar_lea.vmem %s8, %s544
      %p546 = scmp.lt.s32.totalorder %s24, 1
      %s547 = scalar_select %p546, %s24, 1
      %p548 = scmp.lt.s32.totalorder %s25, 0
      %s549 = scalar_select %p548, %s25, 0
      %s550 = sadd.s32 %s549, %s547
      %s551 = smul.addr %s550, 8
      %s552 = scalar_lea.vmem %s9, %s551
      %v554 = vld [vmem:[%s495] sm:$0xff]
      %v555 = vld [vmem:[%s502] sm:$0xff]
      %v556 = vld [vmem:[%s507] sm:$0xff]
      %v557 = vld [vmem:[%s507 + $0x8] sm:$0xff]
      %v558 = vld [vmem:[%s512] sm:$0xff]
      %v559 = vld [vmem:[%s512 + $0x8] sm:$0xff]
      %v560 = vld [vmem:[%s512 + $0x10] sm:$0xff]
      %v561 = vld [vmem:[%s522] sm:$0xf]
      %v562 = vld [vmem:[%s522 + $0x4] sm:$0xf]
      %v563 = vld [vmem:[%s522 + $0x8] sm:$0xf]
      %v564 = vld [vmem:[%s522 + $0xc] sm:$0xf]
      %v565 = vld [vmem:[%s522 + $0x10] sm:$0xf]
      %v566 = vld [vmem:[%s522 + $0x14] sm:$0xf]
      %v567 = vld [vmem:[%s522 + $0x18] sm:$0xf]
      %v568 = vld [vmem:[%s522 + $0x1c] sm:$0xf]
      %v569 = vld [vmem:[%s522 + $0x20] sm:$0xf]
      %v570 = vld [vmem:[%s522 + $0x24] sm:$0xf]
      %v571 = vld [vmem:[%s522 + $0x28] sm:$0xf]
      %v572 = vld [vmem:[%s522 + $0x2c] sm:$0xf]
      %v573 = vld [vmem:[%s522 + $0x30] sm:$0xf]
      %v574 = vld [vmem:[%s522 + $0x34] sm:$0xf]
      %v575 = vld [vmem:[%s522 + $0x38] sm:$0xf]
      %v576 = vld [vmem:[%s522 + $0x3c] sm:$0xf]
      %v577 = vunpack.c.l.bf16 %v561
      %v578 = vunpack.c.l.bf16 %v562
      %v579 = vunpack.c.l.bf16 %v563
      %v580 = vunpack.c.l.bf16 %v564
      %v581 = vunpack.c.l.bf16 %v565
      %v582 = vunpack.c.l.bf16 %v566
      %v583 = vunpack.c.l.bf16 %v567
      %v584 = vunpack.c.l.bf16 %v568
      %v585 = vunpack.c.l.bf16 %v569
      %v586 = vunpack.c.l.bf16 %v570
      %v587 = vunpack.c.l.bf16 %v571
      %v588 = vunpack.c.l.bf16 %v572
      %v589 = vunpack.c.l.bf16 %v573
      %v590 = vunpack.c.l.bf16 %v574
      %v591 = vunpack.c.l.bf16 %v575
      %v592 = vunpack.c.l.bf16 %v576
      %v593 = vld [vmem:[%s533] sm:$0xf]
      %v594 = vld [vmem:[%s533 + $0x4] sm:$0xf]
      %v595 = vld [vmem:[%s533 + $0x8] sm:$0xf]
      %v596 = vld [vmem:[%s533 + $0xc] sm:$0xf]
      %v597 = vld [vmem:[%s533 + $0x10] sm:$0xf]
      %v598 = vld [vmem:[%s533 + $0x14] sm:$0xf]
      %v599 = vld [vmem:[%s533 + $0x18] sm:$0xf]
      %v600 = vld [vmem:[%s533 + $0x1c] sm:$0xf]
      %v601 = vld [vmem:[%s533 + $0x20] sm:$0xf]
      %v602 = vld [vmem:[%s533 + $0x24] sm:$0xf]
      %v603 = vld [vmem:[%s533 + $0x28] sm:$0xf]
      %v604 = vld [vmem:[%s533 + $0x2c] sm:$0xf]
      %v605 = vld [vmem:[%s533 + $0x30] sm:$0xf]
      %v606 = vld [vmem:[%s533 + $0x34] sm:$0xf]
      %v607 = vld [vmem:[%s533 + $0x38] sm:$0xf]
      %v608 = vld [vmem:[%s533 + $0x3c] sm:$0xf]
      %v609 = vld [vmem:[%s533 + $0x40] sm:$0xf]
      %v610 = vld [vmem:[%s533 + $0x44] sm:$0xf]
      %v611 = vld [vmem:[%s533 + $0x48] sm:$0xf]
      %v612 = vld [vmem:[%s533 + $0x4c] sm:$0xf]
      %v613 = vld [vmem:[%s533 + $0x50] sm:$0xf]
      %v614 = vld [vmem:[%s533 + $0x54] sm:$0xf]
      %v615 = vld [vmem:[%s533 + $0x58] sm:$0xf]
      %v616 = vld [vmem:[%s533 + $0x5c] sm:$0xf]
      %v617 = vunpack.c.l.bf16 %v593
      %v618 = vunpack.c.l.bf16 %v594
      %v619 = vunpack.c.l.bf16 %v595
      %v620 = vunpack.c.l.bf16 %v596
      %v621 = vunpack.c.l.bf16 %v597
      %v622 = vunpack.c.l.bf16 %v598
      %v623 = vunpack.c.l.bf16 %v599
      %v624 = vunpack.c.l.bf16 %v600
      %v625 = vunpack.c.l.bf16 %v601
      %v626 = vunpack.c.l.bf16 %v602
      %v627 = vunpack.c.l.bf16 %v603
      %v628 = vunpack.c.l.bf16 %v604
      %v629 = vunpack.c.l.bf16 %v605
      %v630 = vunpack.c.l.bf16 %v606
      %v631 = vunpack.c.l.bf16 %v607
      %v632 = vunpack.c.l.bf16 %v608
      %v633 = vunpack.c.l.bf16 %v609
      %v634 = vunpack.c.l.bf16 %v610
      %v635 = vunpack.c.l.bf16 %v611
      %v636 = vunpack.c.l.bf16 %v612
      %v637 = vunpack.c.l.bf16 %v613
      %v638 = vunpack.c.l.bf16 %v614
      %v639 = vunpack.c.l.bf16 %v615
      %v640 = vunpack.c.l.bf16 %v616
      %v641 = vlaneseq
      %v642 = vshrl.u32 %v641, 7
      %v643 = vsub.s32 0, %v642
      %v644 = vrot.slane %v554, %v643
      %646 = vbcast.lane.b32.xlu0 %v644, 256
      %v647 = vpop.permute.xlu0 %646
      %s649 = sor.u32 256, 8
      %650 = vbcast.lane.b32.xlu0 %v644, %s649
      %v651 = vpop.permute.xlu0 %650
      %v652 = vlaneseq
      %v653 = vshrl.u32 %v652, 7
      %v654 = vsub.s32 1, %v653
      %v655 = vrot.slane %v554, %v654
      %657 = vbcast.lane.b32.xlu0 %v655, 256
      %v658 = vpop.permute.xlu0 %657
      %s660 = sor.u32 256, 8
      %661 = vbcast.lane.b32.xlu0 %v655, %s660
      %v662 = vpop.permute.xlu0 %661
      %v663 = vlaneseq
      %v664 = vshrl.u32 %v663, 7
      %v665 = vsub.s32 2, %v664
      %v666 = vrot.slane %v554, %v665
      %668 = vbcast.lane.b32.xlu0 %v666, 256
      %v669 = vpop.permute.xlu0 %668
      %s671 = sor.u32 256, 8
      %672 = vbcast.lane.b32.xlu0 %v666, %s671
      %v673 = vpop.permute.xlu0 %672
      %v674 = vlaneseq
      %v675 = vshrl.u32 %v674, 7
      %v676 = vsub.s32 3, %v675
      %v677 = vrot.slane %v554, %v676
      %679 = vbcast.lane.b32.xlu0 %v677, 256
      %v680 = vpop.permute.xlu0 %679
      %s682 = sor.u32 256, 8
      %683 = vbcast.lane.b32.xlu0 %v677, %s682
      %v684 = vpop.permute.xlu0 %683
      %v685 = vlaneseq
      %v686 = vshrl.u32 %v685, 7
      %v687 = vsub.s32 4, %v686
      %v688 = vrot.slane %v554, %v687
      %690 = vbcast.lane.b32.xlu0 %v688, 256
      %v691 = vpop.permute.xlu0 %690
      %s693 = sor.u32 256, 8
      %694 = vbcast.lane.b32.xlu0 %v688, %s693
      %v695 = vpop.permute.xlu0 %694
      %v696 = vlaneseq
      %v697 = vshrl.u32 %v696, 7
      %v698 = vsub.s32 5, %v697
      %v699 = vrot.slane %v554, %v698
      %701 = vbcast.lane.b32.xlu0 %v699, 256
      %v702 = vpop.permute.xlu0 %701
      %s704 = sor.u32 256, 8
      %705 = vbcast.lane.b32.xlu0 %v699, %s704
      %v706 = vpop.permute.xlu0 %705
      %v707 = vlaneseq
      %v708 = vshrl.u32 %v707, 7
      %v709 = vsub.s32 6, %v708
      %v710 = vrot.slane %v554, %v709
      %712 = vbcast.lane.b32.xlu0 %v710, 256
      %v713 = vpop.permute.xlu0 %712
      %s715 = sor.u32 256, 8
      %716 = vbcast.lane.b32.xlu0 %v710, %s715
      %v717 = vpop.permute.xlu0 %716
      %v718 = vlaneseq
      %v719 = vshrl.u32 %v718, 7
      %v720 = vsub.s32 7, %v719
      %v721 = vrot.slane %v554, %v720
      %723 = vbcast.lane.b32.xlu0 %v721, 256
      %v724 = vpop.permute.xlu0 %723
      %s726 = sor.u32 256, 8
      %727 = vbcast.lane.b32.xlu0 %v721, %s726
      %v728 = vpop.permute.xlu0 %727
      %v729 = vmul.f32 %v647, %v556
      %v730 = vmul.f32 %v651, %v557
      %v731 = vmul.f32 %v658, %v556
      %v732 = vmul.f32 %v662, %v557
      %v733 = vmul.f32 %v669, %v556
      %v734 = vmul.f32 %v673, %v557
      %v735 = vmul.f32 %v680, %v556
      %v736 = vmul.f32 %v684, %v557
      %v737 = vmul.f32 %v691, %v556
      %v738 = vmul.f32 %v695, %v557
      %v739 = vmul.f32 %v702, %v556
      %v740 = vmul.f32 %v706, %v557
      %v741 = vmul.f32 %v713, %v556
      %v742 = vmul.f32 %v717, %v557
      %v743 = vmul.f32 %v724, %v556
      %v744 = vmul.f32 %v728, %v557
      %v745 = vmul.f32 %v729, %v577
      %v746 = vmul.f32 %v730, %v578
      %v747 = vmul.f32 %v731, %v579
      %v748 = vmul.f32 %v732, %v580
      %v749 = vmul.f32 %v733, %v581
      %v750 = vmul.f32 %v734, %v582
      %v751 = vmul.f32 %v735, %v583
      %v752 = vmul.f32 %v736, %v584
      %v753 = vmul.f32 %v737, %v585
      %v754 = vmul.f32 %v738, %v586
      %v755 = vmul.f32 %v739, %v587
      %v756 = vmul.f32 %v740, %v588
      %v757 = vmul.f32 %v741, %v589
      %v758 = vmul.f32 %v742, %v590
      %v759 = vmul.f32 %v743, %v591
      %v760 = vmul.f32 %v744, %v592
      %v761 = vlaneseq
      %v762 = vshrl.u32 %v761, 7
      %v763 = vsub.s32 0, %v762
      %v764 = vrot.slane %v555, %v763
      %766 = vbcast.lane.b32.xlu0 %v764, 256
      %v767 = vpop.permute.xlu0 %766
      %s769 = sor.u32 256, 8
      %770 = vbcast.lane.b32.xlu0 %v764, %s769
      %v771 = vpop.permute.xlu0 %770
      %s773 = sor.u32 256, 16
      %774 = vbcast.lane.b32.xlu0 %v764, %s773
      %v775 = vpop.permute.xlu0 %774
      %v776 = vlaneseq
      %v777 = vshrl.u32 %v776, 7
      %v778 = vsub.s32 1, %v777
      %v779 = vrot.slane %v555, %v778
      %781 = vbcast.lane.b32.xlu0 %v779, 256
      %v782 = vpop.permute.xlu0 %781
      %s784 = sor.u32 256, 8
      %785 = vbcast.lane.b32.xlu0 %v779, %s784
      %v786 = vpop.permute.xlu0 %785
      %s788 = sor.u32 256, 16
      %789 = vbcast.lane.b32.xlu0 %v779, %s788
      %v790 = vpop.permute.xlu0 %789
      %v791 = vlaneseq
      %v792 = vshrl.u32 %v791, 7
      %v793 = vsub.s32 2, %v792
      %v794 = vrot.slane %v555, %v793
      %796 = vbcast.lane.b32.xlu0 %v794, 256
      %v797 = vpop.permute.xlu0 %796
      %s799 = sor.u32 256, 8
      %800 = vbcast.lane.b32.xlu0 %v794, %s799
      %v801 = vpop.permute.xlu0 %800
      %s803 = sor.u32 256, 16
      %804 = vbcast.lane.b32.xlu0 %v794, %s803
      %v805 = vpop.permute.xlu0 %804
      %v806 = vlaneseq
      %v807 = vshrl.u32 %v806, 7
      %v808 = vsub.s32 3, %v807
      %v809 = vrot.slane %v555, %v808
      %811 = vbcast.lane.b32.xlu0 %v809, 256
      %v812 = vpop.permute.xlu0 %811
      %s814 = sor.u32 256, 8
      %815 = vbcast.lane.b32.xlu0 %v809, %s814
      %v816 = vpop.permute.xlu0 %815
      %s818 = sor.u32 256, 16
      %819 = vbcast.lane.b32.xlu0 %v809, %s818
      %v820 = vpop.permute.xlu0 %819
      %v821 = vlaneseq
      %v822 = vshrl.u32 %v821, 7
      %v823 = vsub.s32 4, %v822
      %v824 = vrot.slane %v555, %v823
      %826 = vbcast.lane.b32.xlu0 %v824, 256
      %v827 = vpop.permute.xlu0 %826
      %s829 = sor.u32 256, 8
      %830 = vbcast.lane.b32.xlu0 %v824, %s829
      %v831 = vpop.permute.xlu0 %830
      %s833 = sor.u32 256, 16
      %834 = vbcast.lane.b32.xlu0 %v824, %s833
      %v835 = vpop.permute.xlu0 %834
      %v836 = vlaneseq
      %v837 = vshrl.u32 %v836, 7
      %v838 = vsub.s32 5, %v837
      %v839 = vrot.slane %v555, %v838
      %841 = vbcast.lane.b32.xlu0 %v839, 256
      %v842 = vpop.permute.xlu0 %841
      %s844 = sor.u32 256, 8
      %845 = vbcast.lane.b32.xlu0 %v839, %s844
      %v846 = vpop.permute.xlu0 %845
      %s848 = sor.u32 256, 16
      %849 = vbcast.lane.b32.xlu0 %v839, %s848
      %v850 = vpop.permute.xlu0 %849
      %v851 = vlaneseq
      %v852 = vshrl.u32 %v851, 7
      %v853 = vsub.s32 6, %v852
      %v854 = vrot.slane %v555, %v853
      %856 = vbcast.lane.b32.xlu0 %v854, 256
      %v857 = vpop.permute.xlu0 %856
      %s859 = sor.u32 256, 8
      %860 = vbcast.lane.b32.xlu0 %v854, %s859
      %v861 = vpop.permute.xlu0 %860
      %s863 = sor.u32 256, 16
      %864 = vbcast.lane.b32.xlu0 %v854, %s863
      %v865 = vpop.permute.xlu0 %864
      %v866 = vlaneseq
      %v867 = vshrl.u32 %v866, 7
      %v868 = vsub.s32 7, %v867
      %v869 = vrot.slane %v555, %v868
      %871 = vbcast.lane.b32.xlu0 %v869, 256
      %v872 = vpop.permute.xlu0 %871
      %s874 = sor.u32 256, 8
      %875 = vbcast.lane.b32.xlu0 %v869, %s874
      %v876 = vpop.permute.xlu0 %875
      %s878 = sor.u32 256, 16
      %879 = vbcast.lane.b32.xlu0 %v869, %s878
      %v880 = vpop.permute.xlu0 %879
      %v881 = vmul.f32 %v767, %v558
      %v882 = vmul.f32 %v771, %v559
      %v883 = vmul.f32 %v775, %v560
      %v884 = vmul.f32 %v782, %v558
      %v885 = vmul.f32 %v786, %v559
      %v886 = vmul.f32 %v790, %v560
      %v887 = vmul.f32 %v797, %v558
      %v888 = vmul.f32 %v801, %v559
      %v889 = vmul.f32 %v805, %v560
      %v890 = vmul.f32 %v812, %v558
      %v891 = vmul.f32 %v816, %v559
      %v892 = vmul.f32 %v820, %v560
      %v893 = vmul.f32 %v827, %v558
      %v894 = vmul.f32 %v831, %v559
      %v895 = vmul.f32 %v835, %v560
      %v896 = vmul.f32 %v842, %v558
      %v897 = vmul.f32 %v846, %v559
      %v898 = vmul.f32 %v850, %v560
      %v899 = vmul.f32 %v857, %v558
      %v900 = vmul.f32 %v861, %v559
      %v901 = vmul.f32 %v865, %v560
      %v902 = vmul.f32 %v872, %v558
      %v903 = vmul.f32 %v876, %v559
      %v904 = vmul.f32 %v880, %v560
      %v905 = vmul.f32 %v881, %v617
      %v906 = vmul.f32 %v882, %v618
      %v907 = vmul.f32 %v883, %v619
      %v908 = vmul.f32 %v884, %v620
      %v909 = vmul.f32 %v885, %v621
      %v910 = vmul.f32 %v886, %v622
      %v911 = vmul.f32 %v887, %v623
      %v912 = vmul.f32 %v888, %v624
      %v913 = vmul.f32 %v889, %v625
      %v914 = vmul.f32 %v890, %v626
      %v915 = vmul.f32 %v891, %v627
      %v916 = vmul.f32 %v892, %v628
      %v917 = vmul.f32 %v893, %v629
      %v918 = vmul.f32 %v894, %v630
      %v919 = vmul.f32 %v895, %v631
      %v920 = vmul.f32 %v896, %v632
      %v921 = vmul.f32 %v897, %v633
      %v922 = vmul.f32 %v898, %v634
      %v923 = vmul.f32 %v899, %v635
      %v924 = vmul.f32 %v900, %v636
      %v925 = vmul.f32 %v901, %v637
      %v926 = vmul.f32 %v902, %v638
      %v927 = vmul.f32 %v903, %v639
      %v928 = vmul.f32 %v904, %v640
      %vm929 = vcmask 64512
      %v930 = vsel %vm929, %v745, 0.0
      %v931 = vrot.slane %v930, 4
      %v932 = vadd.f32 %v930, %v931
      %v933 = vrot.slane %v932, 2
      %v934 = vadd.f32 %v932, %v933
      %v935 = vrot.slane %v934, 1
      %v936 = vadd.f32 %v934, %v935
      %v937 = vsel %vm929, %v747, 0.0
      %v938 = vrot.slane %v937, 4
      %v939 = vadd.f32 %v937, %v938
      %v940 = vrot.slane %v939, 2
      %v941 = vadd.f32 %v939, %v940
      %v942 = vrot.slane %v941, 1
      %v943 = vadd.f32 %v941, %v942
      %v944 = vsel %vm929, %v749, 0.0
      %v945 = vrot.slane %v944, 4
      %v946 = vadd.f32 %v944, %v945
      %v947 = vrot.slane %v946, 2
      %v948 = vadd.f32 %v946, %v947
      %v949 = vrot.slane %v948, 1
      %v950 = vadd.f32 %v948, %v949
      %v951 = vsel %vm929, %v751, 0.0
      %v952 = vrot.slane %v951, 4
      %v953 = vadd.f32 %v951, %v952
      %v954 = vrot.slane %v953, 2
      %v955 = vadd.f32 %v953, %v954
      %v956 = vrot.slane %v955, 1
      %v957 = vadd.f32 %v955, %v956
      %v958 = vsel %vm929, %v753, 0.0
      %v959 = vrot.slane %v958, 4
      %v960 = vadd.f32 %v958, %v959
      %v961 = vrot.slane %v960, 2
      %v962 = vadd.f32 %v960, %v961
      %v963 = vrot.slane %v962, 1
      %v964 = vadd.f32 %v962, %v963
      %v965 = vsel %vm929, %v755, 0.0
      %v966 = vrot.slane %v965, 4
      %v967 = vadd.f32 %v965, %v966
      %v968 = vrot.slane %v967, 2
      %v969 = vadd.f32 %v967, %v968
      %v970 = vrot.slane %v969, 1
      %v971 = vadd.f32 %v969, %v970
      %v972 = vsel %vm929, %v757, 0.0
      %v973 = vrot.slane %v972, 4
      %v974 = vadd.f32 %v972, %v973
      %v975 = vrot.slane %v974, 2
      %v976 = vadd.f32 %v974, %v975
      %v977 = vrot.slane %v976, 1
      %v978 = vadd.f32 %v976, %v977
      %v979 = vsel %vm929, %v759, 0.0
      %v980 = vrot.slane %v979, 4
      %v981 = vadd.f32 %v979, %v980
      %v982 = vrot.slane %v981, 2
      %v983 = vadd.f32 %v981, %v982
      %v984 = vrot.slane %v983, 1
      %v985 = vadd.f32 %v983, %v984
      %v986 = vmul.f32 %v936, 0.35355338
      %v987 = vmul.f32 %v943, 0.35355338
      %v988 = vmul.f32 %v950, 0.35355338
      %v989 = vmul.f32 %v957, 0.35355338
      %v990 = vmul.f32 %v964, 0.35355338
      %v991 = vmul.f32 %v971, 0.35355338
      %v992 = vmul.f32 %v978, 0.35355338
      %v993 = vmul.f32 %v985, 0.35355338
      %v994 = vsel %vm929, %v746, 0.0
      %v995 = vrot.slane %v994, 4
      %v996 = vadd.f32 %v994, %v995
      %v997 = vrot.slane %v996, 2
      %v998 = vadd.f32 %v996, %v997
      %v999 = vrot.slane %v998, 1
      %v1000 = vadd.f32 %v998, %v999
      %v1001 = vsel %vm929, %v748, 0.0
      %v1002 = vrot.slane %v1001, 4
      %v1003 = vadd.f32 %v1001, %v1002
      %v1004 = vrot.slane %v1003, 2
      %v1005 = vadd.f32 %v1003, %v1004
      %v1006 = vrot.slane %v1005, 1
      %v1007 = vadd.f32 %v1005, %v1006
      %v1008 = vsel %vm929, %v750, 0.0
      %v1009 = vrot.slane %v1008, 4
      %v1010 = vadd.f32 %v1008, %v1009
      %v1011 = vrot.slane %v1010, 2
      %v1012 = vadd.f32 %v1010, %v1011
      %v1013 = vrot.slane %v1012, 1
      %v1014 = vadd.f32 %v1012, %v1013
      %v1015 = vsel %vm929, %v752, 0.0
      %v1016 = vrot.slane %v1015, 4
      %v1017 = vadd.f32 %v1015, %v1016
      %v1018 = vrot.slane %v1017, 2
      %v1019 = vadd.f32 %v1017, %v1018
      %v1020 = vrot.slane %v1019, 1
      %v1021 = vadd.f32 %v1019, %v1020
      %v1022 = vsel %vm929, %v754, 0.0
      %v1023 = vrot.slane %v1022, 4
      %v1024 = vadd.f32 %v1022, %v1023
      %v1025 = vrot.slane %v1024, 2
      %v1026 = vadd.f32 %v1024, %v1025
      %v1027 = vrot.slane %v1026, 1
      %v1028 = vadd.f32 %v1026, %v1027
      %v1029 = vsel %vm929, %v756, 0.0
      %v1030 = vrot.slane %v1029, 4
      %v1031 = vadd.f32 %v1029, %v1030
      %v1032 = vrot.slane %v1031, 2
      %v1033 = vadd.f32 %v1031, %v1032
      %v1034 = vrot.slane %v1033, 1
      %v1035 = vadd.f32 %v1033, %v1034
      %v1036 = vsel %vm929, %v758, 0.0
      %v1037 = vrot.slane %v1036, 4
      %v1038 = vadd.f32 %v1036, %v1037
      %v1039 = vrot.slane %v1038, 2
      %v1040 = vadd.f32 %v1038, %v1039
      %v1041 = vrot.slane %v1040, 1
      %v1042 = vadd.f32 %v1040, %v1041
      %v1043 = vsel %vm929, %v760, 0.0
      %v1044 = vrot.slane %v1043, 4
      %v1045 = vadd.f32 %v1043, %v1044
      %v1046 = vrot.slane %v1045, 2
      %v1047 = vadd.f32 %v1045, %v1046
      %v1048 = vrot.slane %v1047, 1
      %v1049 = vadd.f32 %v1047, %v1048
      %v1050 = vmul.f32 %v1000, 0.35355338
      %v1051 = vmul.f32 %v1007, 0.35355338
      %v1052 = vmul.f32 %v1014, 0.35355338
      %v1053 = vmul.f32 %v1021, 0.35355338
      %v1054 = vmul.f32 %v1028, 0.35355338
      %v1055 = vmul.f32 %v1035, 0.35355338
      %v1056 = vmul.f32 %v1042, 0.35355338
      %v1057 = vmul.f32 %v1049, 0.35355338
      %v1058 = vsel %vm929, %v905, 0.0
      %vm1059 = vcmask 60416
      %v1060 = vsel %vm1059, %v906, 0.0
      %v1061 = vadd.f32 %v1058, %v1060
      %v1062 = vrot.slane %v1061, 4
      %v1063 = vadd.f32 %v1061, %v1062
      %v1064 = vrot.slane %v1063, 2
      %v1065 = vadd.f32 %v1063, %v1064
      %v1066 = vrot.slane %v1065, 1
      %v1067 = vadd.f32 %v1065, %v1066
      %v1068 = vsel %vm929, %v908, 0.0
      %v1069 = vsel %vm1059, %v909, 0.0
      %v1070 = vadd.f32 %v1068, %v1069
      %v1071 = vrot.slane %v1070, 4
      %v1072 = vadd.f32 %v1070, %v1071
      %v1073 = vrot.slane %v1072, 2
      %v1074 = vadd.f32 %v1072, %v1073
      %v1075 = vrot.slane %v1074, 1
      %v1076 = vadd.f32 %v1074, %v1075
      %v1077 = vsel %vm929, %v911, 0.0
      %v1078 = vsel %vm1059, %v912, 0.0
      %v1079 = vadd.f32 %v1077, %v1078
      %v1080 = vrot.slane %v1079, 4
      %v1081 = vadd.f32 %v1079, %v1080
      %v1082 = vrot.slane %v1081, 2
      %v1083 = vadd.f32 %v1081, %v1082
      %v1084 = vrot.slane %v1083, 1
      %v1085 = vadd.f32 %v1083, %v1084
      %v1086 = vsel %vm929, %v914, 0.0
      %v1087 = vsel %vm1059, %v915, 0.0
      %v1088 = vadd.f32 %v1086, %v1087
      %v1089 = vrot.slane %v1088, 4
      %v1090 = vadd.f32 %v1088, %v1089
      %v1091 = vrot.slane %v1090, 2
      %v1092 = vadd.f32 %v1090, %v1091
      %v1093 = vrot.slane %v1092, 1
      %v1094 = vadd.f32 %v1092, %v1093
      %v1095 = vsel %vm929, %v917, 0.0
      %v1096 = vsel %vm1059, %v918, 0.0
      %v1097 = vadd.f32 %v1095, %v1096
      %v1098 = vrot.slane %v1097, 4
      %v1099 = vadd.f32 %v1097, %v1098
      %v1100 = vrot.slane %v1099, 2
      %v1101 = vadd.f32 %v1099, %v1100
      %v1102 = vrot.slane %v1101, 1
      %v1103 = vadd.f32 %v1101, %v1102
      %v1104 = vsel %vm929, %v920, 0.0
      %v1105 = vsel %vm1059, %v921, 0.0
      %v1106 = vadd.f32 %v1104, %v1105
      %v1107 = vrot.slane %v1106, 4
      %v1108 = vadd.f32 %v1106, %v1107
      %v1109 = vrot.slane %v1108, 2
      %v1110 = vadd.f32 %v1108, %v1109
      %v1111 = vrot.slane %v1110, 1
      %v1112 = vadd.f32 %v1110, %v1111
      %v1113 = vsel %vm929, %v923, 0.0
      %v1114 = vsel %vm1059, %v924, 0.0
      %v1115 = vadd.f32 %v1113, %v1114
      %v1116 = vrot.slane %v1115, 4
      %v1117 = vadd.f32 %v1115, %v1116
      %v1118 = vrot.slane %v1117, 2
      %v1119 = vadd.f32 %v1117, %v1118
      %v1120 = vrot.slane %v1119, 1
      %v1121 = vadd.f32 %v1119, %v1120
      %v1122 = vsel %vm929, %v926, 0.0
      %v1123 = vsel %vm1059, %v927, 0.0
      %v1124 = vadd.f32 %v1122, %v1123
      %v1125 = vrot.slane %v1124, 4
      %v1126 = vadd.f32 %v1124, %v1125
      %v1127 = vrot.slane %v1126, 2
      %v1128 = vadd.f32 %v1126, %v1127
      %v1129 = vrot.slane %v1128, 1
      %v1130 = vadd.f32 %v1128, %v1129
      %v1131 = vmul.f32 %v1067, 0.28867513
      %v1132 = vmul.f32 %v1076, 0.28867513
      %v1133 = vmul.f32 %v1085, 0.28867513
      %v1134 = vmul.f32 %v1094, 0.28867513
      %v1135 = vmul.f32 %v1103, 0.28867513
      %v1136 = vmul.f32 %v1112, 0.28867513
      %v1137 = vmul.f32 %v1121, 0.28867513
      %v1138 = vmul.f32 %v1130, 0.28867513
      %vm1155 = vcmask 1043456
      %v1156 = vrot.slane %v906, 4
      %v1157 = vrot.slane %v907, 4
      %v1158 = vsel %vm1155, %v1156, %v1157
      %v1159 = vrot.slane %v909, 4
      %v1160 = vrot.slane %v910, 4
      %v1161 = vsel %vm1155, %v1159, %v1160
      %v1162 = vrot.slane %v912, 4
      %v1163 = vrot.slane %v913, 4
      %v1164 = vsel %vm1155, %v1162, %v1163
      %v1165 = vrot.slane %v915, 4
      %v1166 = vrot.slane %v916, 4
      %v1167 = vsel %vm1155, %v1165, %v1166
      %v1168 = vrot.slane %v918, 4
      %v1169 = vrot.slane %v919, 4
      %v1170 = vsel %vm1155, %v1168, %v1169
      %v1171 = vrot.slane %v921, 4
      %v1172 = vrot.slane %v922, 4
      %v1173 = vsel %vm1155, %v1171, %v1172
      %v1174 = vrot.slane %v924, 4
      %v1175 = vrot.slane %v925, 4
      %v1176 = vsel %vm1155, %v1174, %v1175
      %v1177 = vrot.slane %v927, 4
      %v1178 = vrot.slane %v928, 4
      %v1179 = vsel %vm1155, %v1177, %v1178
      %v1196 = vsel %vm929, %v1158, 0.0
      %v1197 = vsel %vm1059, %v1157, 0.0
      %v1198 = vadd.f32 %v1196, %v1197
      %v1199 = vrot.slane %v1198, 4
      %v1200 = vadd.f32 %v1198, %v1199
      %v1201 = vrot.slane %v1200, 2
      %v1202 = vadd.f32 %v1200, %v1201
      %v1203 = vrot.slane %v1202, 1
      %v1204 = vadd.f32 %v1202, %v1203
      %v1205 = vsel %vm929, %v1161, 0.0
      %v1206 = vsel %vm1059, %v1160, 0.0
      %v1207 = vadd.f32 %v1205, %v1206
      %v1208 = vrot.slane %v1207, 4
      %v1209 = vadd.f32 %v1207, %v1208
      %v1210 = vrot.slane %v1209, 2
      %v1211 = vadd.f32 %v1209, %v1210
      %v1212 = vrot.slane %v1211, 1
      %v1213 = vadd.f32 %v1211, %v1212
      %v1214 = vsel %vm929, %v1164, 0.0
      %v1215 = vsel %vm1059, %v1163, 0.0
      %v1216 = vadd.f32 %v1214, %v1215
      %v1217 = vrot.slane %v1216, 4
      %v1218 = vadd.f32 %v1216, %v1217
      %v1219 = vrot.slane %v1218, 2
      %v1220 = vadd.f32 %v1218, %v1219
      %v1221 = vrot.slane %v1220, 1
      %v1222 = vadd.f32 %v1220, %v1221
      %v1223 = vsel %vm929, %v1167, 0.0
      %v1224 = vsel %vm1059, %v1166, 0.0
      %v1225 = vadd.f32 %v1223, %v1224
      %v1226 = vrot.slane %v1225, 4
      %v1227 = vadd.f32 %v1225, %v1226
      %v1228 = vrot.slane %v1227, 2
      %v1229 = vadd.f32 %v1227, %v1228
      %v1230 = vrot.slane %v1229, 1
      %v1231 = vadd.f32 %v1229, %v1230
      %v1232 = vsel %vm929, %v1170, 0.0
      %v1233 = vsel %vm1059, %v1169, 0.0
      %v1234 = vadd.f32 %v1232, %v1233
      %v1235 = vrot.slane %v1234, 4
      %v1236 = vadd.f32 %v1234, %v1235
      %v1237 = vrot.slane %v1236, 2
      %v1238 = vadd.f32 %v1236, %v1237
      %v1239 = vrot.slane %v1238, 1
      %v1240 = vadd.f32 %v1238, %v1239
      %v1241 = vsel %vm929, %v1173, 0.0
      %v1242 = vsel %vm1059, %v1172, 0.0
      %v1243 = vadd.f32 %v1241, %v1242
      %v1244 = vrot.slane %v1243, 4
      %v1245 = vadd.f32 %v1243, %v1244
      %v1246 = vrot.slane %v1245, 2
      %v1247 = vadd.f32 %v1245, %v1246
      %v1248 = vrot.slane %v1247, 1
      %v1249 = vadd.f32 %v1247, %v1248
      %v1250 = vsel %vm929, %v1176, 0.0
      %v1251 = vsel %vm1059, %v1175, 0.0
      %v1252 = vadd.f32 %v1250, %v1251
      %v1253 = vrot.slane %v1252, 4
      %v1254 = vadd.f32 %v1252, %v1253
      %v1255 = vrot.slane %v1254, 2
      %v1256 = vadd.f32 %v1254, %v1255
      %v1257 = vrot.slane %v1256, 1
      %v1258 = vadd.f32 %v1256, %v1257
      %v1259 = vsel %vm929, %v1179, 0.0
      %v1260 = vsel %vm1059, %v1178, 0.0
      %v1261 = vadd.f32 %v1259, %v1260
      %v1262 = vrot.slane %v1261, 4
      %v1263 = vadd.f32 %v1261, %v1262
      %v1264 = vrot.slane %v1263, 2
      %v1265 = vadd.f32 %v1263, %v1264
      %v1266 = vrot.slane %v1265, 1
      %v1267 = vadd.f32 %v1265, %v1266
      %v1268 = vmul.f32 %v1204, 0.28867513
      %v1269 = vmul.f32 %v1213, 0.28867513
      %v1270 = vmul.f32 %v1222, 0.28867513
      %v1271 = vmul.f32 %v1231, 0.28867513
      %v1272 = vmul.f32 %v1240, 0.28867513
      %v1273 = vmul.f32 %v1249, 0.28867513
      %v1274 = vmul.f32 %v1258, 0.28867513
      %v1275 = vmul.f32 %v1267, 0.28867513
      %vm1276 = vcmask 1040384
      %v1277 = vsel %vm1276, %v986, %v1050
      %v1278 = vsel %vm1276, %v987, %v1051
      %v1279 = vsel %vm1276, %v988, %v1052
      %v1280 = vsel %vm1276, %v989, %v1053
      %v1281 = vsel %vm1276, %v990, %v1054
      %v1282 = vsel %vm1276, %v991, %v1055
      %v1283 = vsel %vm1276, %v992, %v1056
      %v1284 = vsel %vm1276, %v993, %v1057
      %vm1285 = vcmask 1041408
      %v1286 = vsel %vm1285, %v1277, %v1131
      %v1287 = vsel %vm1285, %v1278, %v1132
      %v1288 = vsel %vm1285, %v1279, %v1133
      %v1289 = vsel %vm1285, %v1280, %v1134
      %v1290 = vsel %vm1285, %v1281, %v1135
      %v1291 = vsel %vm1285, %v1282, %v1136
      %v1292 = vsel %vm1285, %v1283, %v1137
      %v1293 = vsel %vm1285, %v1284, %v1138
      %vm1294 = vcmask 1042432
      %v1295 = vsel %vm1294, %v1286, %v1268
      %v1296 = vsel %vm1294, %v1287, %v1269
      %v1297 = vsel %vm1294, %v1288, %v1270
      %v1298 = vsel %vm1294, %v1289, %v1271
      %v1299 = vsel %vm1294, %v1290, %v1272
      %v1300 = vsel %vm1294, %v1291, %v1273
      %v1301 = vsel %vm1294, %v1292, %v1274
      %v1302 = vsel %vm1294, %v1293, %v1275
      %v1303 = vld [vmem:[%s545] sm:$0x1]
      %vm1304 = vcmp.gt.f32.partialorder %v1303, 0.5
      %v1305 = vsel %vm1304, 1, 0
      %v1306 = vlaneseq
      %v1307 = vshrl.u32 %v1306, 7
      %v1308 = vsub.s32 0, %v1307
      %v1309 = vrot.slane %v1305, %v1308
      %vm1310 = vcmp.eq.s32.totalorder %v1309, 1
      %v1311 = vsel %vm1310, %v1295, -3.4028235e+38
      %v1312 = vsel %vm1310, %v1296, -3.4028235e+38
      %v1313 = vsel %vm1310, %v1297, -3.4028235e+38
      %v1314 = vsel %vm1310, %v1298, -3.4028235e+38
      %v1315 = vsel %vm1310, %v1299, -3.4028235e+38
      %v1316 = vsel %vm1310, %v1300, -3.4028235e+38
      %v1317 = vsel %vm1310, %v1301, -3.4028235e+38
      %v1318 = vsel %vm1310, %v1302, -3.4028235e+38
      %v1319 = vsel %vm1059, %v1311, -inf
      %1320 = vmax.xlane.f32.xlu0 %v1319
      %v1321 = vpop.xlane.xlu0 %1320
      %v1322 = vsel %vm1059, %v1312, -inf
      %1323 = vmax.xlane.f32.xlu0 %v1322
      %v1324 = vpop.xlane.xlu0 %1323
      %v1325 = vsel %vm1059, %v1313, -inf
      %1326 = vmax.xlane.f32.xlu0 %v1325
      %v1327 = vpop.xlane.xlu0 %1326
      %v1328 = vsel %vm1059, %v1314, -inf
      %1329 = vmax.xlane.f32.xlu0 %v1328
      %v1330 = vpop.xlane.xlu0 %1329
      %v1331 = vsel %vm1059, %v1315, -inf
      %1332 = vmax.xlane.f32.xlu0 %v1331
      %v1333 = vpop.xlane.xlu0 %1332
      %v1334 = vsel %vm1059, %v1316, -inf
      %1335 = vmax.xlane.f32.xlu0 %v1334
      %v1336 = vpop.xlane.xlu0 %1335
      %v1337 = vsel %vm1059, %v1317, -inf
      %1338 = vmax.xlane.f32.xlu0 %v1337
      %v1339 = vpop.xlane.xlu0 %1338
      %v1340 = vsel %vm1059, %v1318, -inf
      %1341 = vmax.xlane.f32.xlu0 %v1340
      %v1342 = vpop.xlane.xlu0 %1341
      %v1343 = vsub.f32 %v1311, %v1321
      %v1344 = vsub.f32 %v1312, %v1324
      %v1345 = vsub.f32 %v1313, %v1327
      %v1346 = vsub.f32 %v1314, %v1330
      %v1347 = vsub.f32 %v1315, %v1333
      %v1348 = vsub.f32 %v1316, %v1336
      %v1349 = vsub.f32 %v1317, %v1339
      %v1350 = vsub.f32 %v1318, %v1342
      %v1351 = vmul.f32 %v1343, 1.442695
      %v1352 = vpow.pop %v1351
      %v1353 = vmul.f32 %v1344, 1.442695
      %v1354 = vpow.pop %v1353
      %v1355 = vmul.f32 %v1345, 1.442695
      %v1356 = vpow.pop %v1355
      %v1357 = vmul.f32 %v1346, 1.442695
      %v1358 = vpow.pop %v1357
      %v1359 = vmul.f32 %v1347, 1.442695
      %v1360 = vpow.pop %v1359
      %v1361 = vmul.f32 %v1348, 1.442695
      %v1362 = vpow.pop %v1361
      %v1363 = vmul.f32 %v1349, 1.442695
      %v1364 = vpow.pop %v1363
      %v1365 = vmul.f32 %v1350, 1.442695
      %v1366 = vpow.pop %v1365
      %v1367 = vsel %vm1059, %v1352, 0.0
      %1368 = vadd.xlane.f32.xlu0 %v1367
      %v1369 = vpop.xlane.xlu0 %1368
      %v1370 = vsel %vm1059, %v1354, 0.0
      %1371 = vadd.xlane.f32.xlu0 %v1370
      %v1372 = vpop.xlane.xlu0 %1371
      %v1373 = vsel %vm1059, %v1356, 0.0
      %1374 = vadd.xlane.f32.xlu0 %v1373
      %v1375 = vpop.xlane.xlu0 %1374
      %v1376 = vsel %vm1059, %v1358, 0.0
      %1377 = vadd.xlane.f32.xlu0 %v1376
      %v1378 = vpop.xlane.xlu0 %1377
      %v1379 = vsel %vm1059, %v1360, 0.0
      %1380 = vadd.xlane.f32.xlu0 %v1379
      %v1381 = vpop.xlane.xlu0 %1380
      %v1382 = vsel %vm1059, %v1362, 0.0
      %1383 = vadd.xlane.f32.xlu0 %v1382
      %v1384 = vpop.xlane.xlu0 %1383
      %v1385 = vsel %vm1059, %v1364, 0.0
      %1386 = vadd.xlane.f32.xlu0 %v1385
      %v1387 = vpop.xlane.xlu0 %1386
      %v1388 = vsel %vm1059, %v1366, 0.0
      %1389 = vadd.xlane.f32.xlu0 %v1388
      %v1390 = vpop.xlane.xlu0 %1389
      %v1391 = vrcp.pop %v1369
      %v1392 = vrcp.pop %v1372
      %v1393 = vrcp.pop %v1375
      %v1394 = vrcp.pop %v1378
      %v1395 = vrcp.pop %v1381
      %v1396 = vrcp.pop %v1384
      %v1397 = vrcp.pop %v1387
      %v1398 = vrcp.pop %v1390
      %v1399 = vmul.f32 %v1352, %v1391
      %v1400 = vmul.f32 %v1354, %v1392
      %v1401 = vmul.f32 %v1356, %v1393
      %v1402 = vmul.f32 %v1358, %v1394
      %v1403 = vmul.f32 %v1360, %v1395
      %v1404 = vmul.f32 %v1362, %v1396
      %v1405 = vmul.f32 %v1364, %v1397
      %v1406 = vmul.f32 %v1366, %v1398
      %v1407 = vld [vmem:[%s538] sm:$0xf]
      %v1408 = vld [vmem:[%s542] sm:$0xf]
      %v1409 = vpack.c.bf16 %v1399, %v1399
      %v1410 = vpack.c.bf16 %v1400, %v1400
      %v1411 = vpack.c.bf16 %v1401, %v1401
      %v1412 = vpack.c.bf16 %v1402, %v1402
      %v1413 = vpack.c.bf16 %v1403, %v1403
      %v1414 = vpack.c.bf16 %v1404, %v1404
      %v1415 = vpack.c.bf16 %v1405, %v1405
      %v1416 = vpack.c.bf16 %v1406, %v1406
      %v1425 = vunpack.c.l.b16 %v1409
      %v1426 = vunpack.c.l.b16 %v1410
      %v1427 = vunpack.c.l.b16 %v1411
      %v1428 = vunpack.c.l.b16 %v1412
      %v1429 = vunpack.c.l.b16 %v1413
      %v1430 = vunpack.c.l.b16 %v1414
      %v1431 = vunpack.c.l.b16 %v1415
      %v1432 = vunpack.c.l.b16 %v1416
      %v1433 = vrot.slane %v1426, 7
      %vm1434 = vcmask 1041409
      %v1435 = vsel %vm1434, %v1433, %v1425
      %v1436 = vrot.slane %v1427, 6
      %vm1437 = vcmask 1042434
      %v1438 = vsel %vm1437, %v1436, %v1435
      %v1439 = vrot.slane %v1428, 5
      %vm1440 = vcmask 1043459
      %v1441 = vsel %vm1440, %v1439, %v1438
      %v1442 = vrot.slane %v1429, 4
      %vm1443 = vcmask 1044484
      %v1444 = vsel %vm1443, %v1442, %v1441
      %v1445 = vrot.slane %v1430, 3
      %vm1446 = vcmask 1045509
      %v1447 = vsel %vm1446, %v1445, %v1444
      %v1448 = vrot.slane %v1431, 2
      %vm1449 = vcmask 1046534
      %v1450 = vsel %vm1449, %v1448, %v1447
      %v1451 = vrot.slane %v1432, 1
      %vm1452 = vcmask 1047559
      %v1453 = vsel %vm1452, %v1451, %v1450
      %v1454 = vpack.c.b16 %v1453, %v1453
      %v1456 = vsel %vm929, %v1454, 0
      %v1459 = vsel %vm1155, %v1407, 0
      %1461 = vmatprep.subr.bf16.mxu0 0
      %1462 = vmatpush1.bf16.msra.mxu0 %v1459
      %1463 = vmatprep.subr.bf16.mxu0 0
      %1464 = vmatpush1.bf16.msra.mxu0 0
      %1465 = vmatprep.subr.bf16.mxu0 0
      %1466 = vmatpush1.bf16.msra.mxu0 0
      %1467 = vmatprep.subr.bf16.mxu0 0
      %1468 = vmatpush1.bf16.msra.mxu0 0
      %1469 = vmatprep.subr.bf16.mxu0 0
      %1470 = vmatpush1.bf16.msra.mxu0 0
      %1471 = vmatprep.subr.bf16.mxu0 0
      %1472 = vmatpush1.bf16.msra.mxu0 0
      %1473 = vmatprep.subr.bf16.mxu0 0
      %1474 = vmatpush1.bf16.msra.mxu0 0
      %1475 = vmatprep.subr.bf16.mxu0 0
      %1476 = vmatpush1.bf16.msra.mxu0 0
      %1477 = vmatprep.subr.bf16.mxu0 0
      %1478 = vmatpush1.bf16.msra.mxu0 0
      %1479 = vmatprep.subr.bf16.mxu0 0
      %1480 = vmatpush1.bf16.msra.mxu0 0
      %1481 = vmatprep.subr.bf16.mxu0 0
      %1482 = vmatpush1.bf16.msra.mxu0 0
      %1483 = vmatprep.subr.bf16.mxu0 0
      %1484 = vmatpush1.bf16.msra.mxu0 0
      %1485 = vmatprep.subr.bf16.mxu0 0
      %1486 = vmatpush1.bf16.msra.mxu0 0
      %1487 = vmatprep.subr.bf16.mxu0 0
      %1488 = vmatpush1.bf16.msra.mxu0 0
      %1489 = vmatprep.subr.bf16.mxu0 0
      %1490 = vmatpush1.bf16.msra.mxu0 0
      %1491 = vmatprep.subr.bf16.mxu0 0
      %1492 = vmatpush1.bf16.msra.mxu0 0
      %1493 = vmatprep.mubr.bf16.mxu0 0
      %1494 = vmatmul.mubr.bf16.gmra.mrb[0].mxu0 %v1456
      %v1495 = vpop.f32.mrb[0].mxu0
      %v1496 = vadd.f32 0.0, %v1495
      %v1497 = vpop.f32.mrb[0].mxu0
      %v1498 = vpop.f32.mrb[0].mxu0
      %v1499 = vpop.f32.mrb[0].mxu0
      %1500 = vdwg.mxu0
      %1501 = vst.msk [vmem:[%s552] sm:$0xff] %vm929, %v1496
      %v1502 = vrot.slane %v1425, 1
      %v1503 = vsel %vm1434, %v1426, %v1502
      %v1504 = vrot.slane %v1427, 7
      %v1505 = vsel %vm1437, %v1504, %v1503
      %v1506 = vrot.slane %v1428, 6
      %v1507 = vsel %vm1440, %v1506, %v1505
      %v1508 = vrot.slane %v1429, 5
      %v1509 = vsel %vm1443, %v1508, %v1507
      %v1510 = vrot.slane %v1430, 4
      %v1511 = vsel %vm1446, %v1510, %v1509
      %v1512 = vrot.slane %v1431, 3
      %v1513 = vsel %vm1449, %v1512, %v1511
      %v1514 = vrot.slane %v1432, 2
      %v1515 = vsel %vm1452, %v1514, %v1513
      %v1516 = vpack.c.b16 %v1515, %v1515
      %v1518 = vunpack.c.l.b16 %v1407
      %v1519 = vpack.c.b16 %v1518, %v1518
      %1520 = vrot.lane.b32.xlu0 %v1519, 120
      %v1521 = vpop.permute.xlu0 %1520
      %v1523 = vsel %vm929, %v1516, 0
      %v1526 = vsel %vm1155, %v1521, 0
      %1528 = vmatprep.subr.bf16.mxu0 0
      %1529 = vmatpush1.bf16.msra.mxu0 %v1526
      %1530 = vmatprep.subr.bf16.mxu0 0
      %1531 = vmatpush1.bf16.msra.mxu0 0
      %1532 = vmatprep.subr.bf16.mxu0 0
      %1533 = vmatpush1.bf16.msra.mxu0 0
      %1534 = vmatprep.subr.bf16.mxu0 0
      %1535 = vmatpush1.bf16.msra.mxu0 0
      %1536 = vmatprep.subr.bf16.mxu0 0
      %1537 = vmatpush1.bf16.msra.mxu0 0
      %1538 = vmatprep.subr.bf16.mxu0 0
      %1539 = vmatpush1.bf16.msra.mxu0 0
      %1540 = vmatprep.subr.bf16.mxu0 0
      %1541 = vmatpush1.bf16.msra.mxu0 0
      %1542 = vmatprep.subr.bf16.mxu0 0
      %1543 = vmatpush1.bf16.msra.mxu0 0
      %1544 = vmatprep.subr.bf16.mxu0 0
      %1545 = vmatpush1.bf16.msra.mxu0 0
      %1546 = vmatprep.subr.bf16.mxu0 0
      %1547 = vmatpush1.bf16.msra.mxu0 0
      %1548 = vmatprep.subr.bf16.mxu0 0
      %1549 = vmatpush1.bf16.msra.mxu0 0
      %1550 = vmatprep.subr.bf16.mxu0 0
      %1551 = vmatpush1.bf16.msra.mxu0 0
      %1552 = vmatprep.subr.bf16.mxu0 0
      %1553 = vmatpush1.bf16.msra.mxu0 0
      %1554 = vmatprep.subr.bf16.mxu0 0
      %1555 = vmatpush1.bf16.msra.mxu0 0
      %1556 = vmatprep.subr.bf16.mxu0 0
      %1557 = vmatpush1.bf16.msra.mxu0 0
      %1558 = vmatprep.subr.bf16.mxu0 0
      %1559 = vmatpush1.bf16.msra.mxu0 0
      %1560 = vmatprep.mubr.bf16.mxu0 0
      %1561 = vmatmul.mubr.bf16.gmra.mrb[0].mxu0 %v1523
      %v1562 = vpop.f32.mrb[0].mxu0
      %v1563 = vadd.f32 0.0, %v1562
      %v1564 = vpop.f32.mrb[0].mxu0
      %v1565 = vpop.f32.mrb[0].mxu0
      %v1566 = vpop.f32.mrb[0].mxu0
      %1567 = vdwg.mxu0
      %1569 = vrot.lane.b32.xlu0 %v1563, 8
      %v1570 = vpop.permute.xlu0 %1569
      %vm1572 = vcmask 130112
      %1573 = vst.msk [vmem:[%s552] sm:$0xff] %vm1572, %v1570
      %v1574 = vrot.slane %v1425, 2
      %v1575 = vrot.slane %v1426, 1
      %v1576 = vsel %vm1434, %v1575, %v1574
      %v1577 = vsel %vm1437, %v1427, %v1576
      %v1578 = vrot.slane %v1428, 7
      %v1579 = vsel %vm1440, %v1578, %v1577
      %v1580 = vrot.slane %v1429, 6
      %v1581 = vsel %vm1443, %v1580, %v1579
      %v1582 = vrot.slane %v1430, 5
      %v1583 = vsel %vm1446, %v1582, %v1581
      %v1584 = vrot.slane %v1431, 4
      %v1585 = vsel %vm1449, %v1584, %v1583
      %v1586 = vrot.slane %v1432, 3
      %v1587 = vsel %vm1452, %v1586, %v1585
      %v1588 = vpack.c.b16 %v1587, %v1587
      %v1590 = vsel %vm929, %v1588, 0
      %v1593 = vsel %vm1155, %v1408, 0
      %1595 = vmatprep.subr.bf16.mxu0 0
      %1596 = vmatpush1.bf16.msra.mxu0 %v1593
      %1597 = vmatprep.subr.bf16.mxu0 0
      %1598 = vmatpush1.bf16.msra.mxu0 0
      %1599 = vmatprep.subr.bf16.mxu0 0
      %1600 = vmatpush1.bf16.msra.mxu0 0
      %1601 = vmatprep.subr.bf16.mxu0 0
      %1602 = vmatpush1.bf16.msra.mxu0 0
      %1603 = vmatprep.subr.bf16.mxu0 0
      %1604 = vmatpush1.bf16.msra.mxu0 0
      %1605 = vmatprep.subr.bf16.mxu0 0
      %1606 = vmatpush1.bf16.msra.mxu0 0
      %1607 = vmatprep.subr.bf16.mxu0 0
      %1608 = vmatpush1.bf16.msra.mxu0 0
      %1609 = vmatprep.subr.bf16.mxu0 0
      %1610 = vmatpush1.bf16.msra.mxu0 0
      %1611 = vmatprep.subr.bf16.mxu0 0
      %1612 = vmatpush1.bf16.msra.mxu0 0
      %1613 = vmatprep.subr.bf16.mxu0 0
      %1614 = vmatpush1.bf16.msra.mxu0 0
      %1615 = vmatprep.subr.bf16.mxu0 0
      %1616 = vmatpush1.bf16.msra.mxu0 0
      %1617 = vmatprep.subr.bf16.mxu0 0
      %1618 = vmatpush1.bf16.msra.mxu0 0
      %1619 = vmatprep.subr.bf16.mxu0 0
      %1620 = vmatpush1.bf16.msra.mxu0 0
      %1621 = vmatprep.subr.bf16.mxu0 0
      %1622 = vmatpush1.bf16.msra.mxu0 0
      %1623 = vmatprep.subr.bf16.mxu0 0
      %1624 = vmatpush1.bf16.msra.mxu0 0
      %1625 = vmatprep.subr.bf16.mxu0 0
      %1626 = vmatpush1.bf16.msra.mxu0 0
      %1627 = vmatprep.mubr.bf16.mxu0 0
      %1628 = vmatmul.mubr.bf16.gmra.mrb[0].mxu0 %v1590
      %v1629 = vpop.f32.mrb[0].mxu0
      %v1630 = vadd.f32 0.0, %v1629
      %v1631 = vpop.f32.mrb[0].mxu0
      %v1632 = vpop.f32.mrb[0].mxu0
      %v1633 = vpop.f32.mrb[0].mxu0
      %1634 = vdwg.mxu0
      %1636 = vrot.lane.b32.xlu0 %v1630, 16
      %v1637 = vpop.permute.xlu0 %1636
      %vm1639 = vcmask 228480
      %1640 = vst.msk [vmem:[%s552] sm:$0xff] %vm1639, %v1637
      %v1641 = vrot.slane %v1425, 3
      %v1642 = vrot.slane %v1426, 2
      %v1643 = vsel %vm1434, %v1642, %v1641
      %v1644 = vrot.slane %v1427, 1
      %v1645 = vsel %vm1437, %v1644, %v1643
      %v1646 = vsel %vm1440, %v1428, %v1645
      %v1647 = vrot.slane %v1429, 7
      %v1648 = vsel %vm1443, %v1647, %v1646
      %v1649 = vrot.slane %v1430, 6
      %v1650 = vsel %vm1446, %v1649, %v1648
      %v1651 = vrot.slane %v1431, 5
      %v1652 = vsel %vm1449, %v1651, %v1650
      %v1653 = vrot.slane %v1432, 4
      %v1654 = vsel %vm1452, %v1653, %v1652
      %v1655 = vpack.c.b16 %v1654, %v1654
      %v1657 = vunpack.c.l.b16 %v1408
      %v1658 = vpack.c.b16 %v1657, %v1657
      %1659 = vrot.lane.b32.xlu0 %v1658, 116
      %v1660 = vpop.permute.xlu0 %1659
      %v1662 = vsel %vm929, %v1655, 0
      %v1665 = vsel %vm1155, %v1660, 0
      %1667 = vmatprep.subr.bf16.mxu0 0
      %1668 = vmatpush1.bf16.msra.mxu0 %v1665
      %1669 = vmatprep.subr.bf16.mxu0 0
      %1670 = vmatpush1.bf16.msra.mxu0 0
      %1671 = vmatprep.subr.bf16.mxu0 0
      %1672 = vmatpush1.bf16.msra.mxu0 0
      %1673 = vmatprep.subr.bf16.mxu0 0
      %1674 = vmatpush1.bf16.msra.mxu0 0
      %1675 = vmatprep.subr.bf16.mxu0 0
      %1676 = vmatpush1.bf16.msra.mxu0 0
      %1677 = vmatprep.subr.bf16.mxu0 0
      %1678 = vmatpush1.bf16.msra.mxu0 0
      %1679 = vmatprep.subr.bf16.mxu0 0
      %1680 = vmatpush1.bf16.msra.mxu0 0
      %1681 = vmatprep.subr.bf16.mxu0 0
      %1682 = vmatpush1.bf16.msra.mxu0 0
      %1683 = vmatprep.subr.bf16.mxu0 0
      %1684 = vmatpush1.bf16.msra.mxu0 0
      %1685 = vmatprep.subr.bf16.mxu0 0
      %1686 = vmatpush1.bf16.msra.mxu0 0
      %1687 = vmatprep.subr.bf16.mxu0 0
      %1688 = vmatpush1.bf16.msra.mxu0 0
      %1689 = vmatprep.subr.bf16.mxu0 0
      %1690 = vmatpush1.bf16.msra.mxu0 0
      %1691 = vmatprep.subr.bf16.mxu0 0
      %1692 = vmatpush1.bf16.msra.mxu0 0
      %1693 = vmatprep.subr.bf16.mxu0 0
      %1694 = vmatpush1.bf16.msra.mxu0 0
      %1695 = vmatprep.subr.bf16.mxu0 0
      %1696 = vmatpush1.bf16.msra.mxu0 0
      %1697 = vmatprep.subr.bf16.mxu0 0
      %1698 = vmatpush1.bf16.msra.mxu0 0
      %1699 = vmatprep.mubr.bf16.mxu0 0
      %1700 = vmatmul.mubr.bf16.gmra.mrb[0].mxu0 %v1662
      %v1701 = vpop.f32.mrb[0].mxu0
      %v1702 = vadd.f32 0.0, %v1701
      %v1703 = vpop.f32.mrb[0].mxu0
      %v1704 = vpop.f32.mrb[0].mxu0
      %v1705 = vpop.f32.mrb[0].mxu0
      %1706 = vdwg.mxu0
      %1708 = vrot.lane.b32.xlu0 %v1702, 28
      %v1709 = vpop.permute.xlu0 %1708
      %vm1711 = vcmask 326880
      %1712 = vst.msk [vmem:[%s552] sm:$0xff] %vm1711, %v1709
      %p1713 = scmp.lt.s32.totalorder %s24, 1
      %s1714 = scalar_select %p1713, %s24, 1
      %p1715 = scmp.lt.s32.totalorder %s25, 0
      %s1716 = scalar_select %p1715, %s25, 0
      %s1717 = sadd.s32 %s1716, %s1714
      %s1718 = smul.addr %s1717, 8
      %s1719 = scalar_lea.vmem %s9, %s1718
      // Predicated region
      $region57: #{gv_graph_transformer_block.3} parent=55 // pred_check
        %p1720 = pneg %p294
      $region58: #{gv_graph_transformer_block.3} parent=55 // pred_check_branch
        %1722 = sbr.rel (%p1720) target = $region60
      $region59: #{gv_graph_transformer_block.3} parent=55 // pred_region
        _
      $region60: #{gv_graph_transformer_block.3} parent=55 // pred_fallthru
        _
    $region56: #{gv_graph_transformer_block.3} parent=5 // pred_fallthru
      _
    %p1723 = scmp.le.s32.totalorder 2, %s15
    // Predicated region
    $region61: #{gv_graph_transformer_block.3} parent=5 // pred_check
      %p1724 = pneg %p1723
    $region62: #{gv_graph_transformer_block.3} parent=5 // pred_check_branch
      %1726 = sbr.rel (%p1724) target = $region64
    $region63: #{gv_graph_transformer_block.3} parent=5 // pred_region
      %s1727 = ssub.s32 %s15, 2
      // Predicated region
      $region65: #{gv_graph_transformer_block.3} parent=63 // pred_check
        %p1728 = pneg %p300
      $region66: #{gv_graph_transformer_block.3} parent=63 // pred_check_branch
        %1730 = sbr.rel (%p1728) target = $region68
      $region67: #{gv_graph_transformer_block.3} parent=63 // pred_region
        %p1731 = scmp.lt.s32.totalorder %s26, 1
        %s1732 = scalar_select %p1731, %s26, 1
        %p1733 = scmp.lt.s32.totalorder %s27, 0
        %s1734 = scalar_select %p1733, %s27, 0
        %s1735 = sadd.s32 %s1734, %s1732
        %s1736 = smul.addr %s1735, 8
        %s1737 = scalar_lea.vmem %s9, %s1736
      $region68: #{gv_graph_transformer_block.3} parent=63 // pred_fallthru
        _
    $region64: #{gv_graph_transformer_block.3} parent=5 // pred_fallthru
      _
  $region6: #{gv_graph_transformer_block.3} parent=0 // loop_footer
    %s19 = sadd.s32 1, %s15
  $region7: #{gv_graph_transformer_block.3} parent=0 // loop_footer_branch
    %14 = sbr.rel target = $region3
  $region8: #{gv_graph_transformer_block.3} parent=0 // loop_exit
    _

// kernel: gv_graph_transformer_block.5
$region0: #{gv_graph_transformer_block.5}
  #allocation0 [shape = 'u32[]', space=smem, size = 0x4, offset = 0x4, fixed_abs, tag = 'smem constant byte address 0x4 - core index']
  #allocation1 [shape = 'u32[144,128]{1,0:T(1,128)}', space=vmem, size = 0x12000, scoped, tag = 'internal scratch']
  %s0 = inlined_call_operand.vmem [shape: f32[16,16], index: 0, kind: input, shape index: {}]
  %s1 = inlined_call_operand.vmem [shape: f32[16,24], index: 1, kind: input, shape index: {}]
  %s2 = inlined_call_operand.vmem [shape: f32[1,16], index: 2, kind: input, shape index: {}]
  %s3 = inlined_call_operand.vmem [shape: f32[1,16], index: 3, kind: input, shape index: {}]
  %s4 = inlined_call_operand.vmem [shape: f32[1,24], index: 4, kind: input, shape index: {}]
  %s5 = inlined_call_operand.vmem [shape: f32[1,24], index: 5, kind: input, shape index: {}]
  %s6 = inlined_call_operand.hbm [shape: f32[16,16], index: 6, kind: output, shape index: {0}]
  %s7 = inlined_call_operand.vmem [shape: f32[16,24], index: 7, kind: output, shape index: {1}]
  %8 = xla_tuple %s6, %s7
  %s9 = sld [smem:[#allocation0]]
  $region42: #{gv_graph_transformer_block.5} parent=0
    _
  %s11 = ssub.s32 1, %s9
  %s12 = scalar_select 0, %s11, %s9
  $region1: #{gv_graph_transformer_block.5} parent=0
    #allocation2 [shape = 'u8[8192]{0}', space=vmem, size = 0x2000, scoped, tag = 'output window, operand 0, single buffered']
    #allocation3 [shape = 's32[1]{0}', space=sflag, size = 0x4, scoped, tag = 'scoped memory for gv_graph_transformer_block.5']
    %13 = vsyncpa [#allocation3], 0
    // Predicated region
    $region2: #{gv_graph_transformer_block.5} parent=1 // pred_check
      _
    $region3: #{gv_graph_transformer_block.5} parent=1 // pred_check_branch
      %15 = sbr.rel (0) target = $region5
    $region4: #{gv_graph_transformer_block.5} parent=1 // pred_region
      _
    $region5: #{gv_graph_transformer_block.5} parent=1 // pred_fallthru
      _
    // Predicated region
    $region6: #{gv_graph_transformer_block.5} parent=1 // pred_check
      _
    $region7: #{gv_graph_transformer_block.5} parent=1 // pred_check_branch
      %17 = sbr.rel (0) target = $region9
    $region8: #{gv_graph_transformer_block.5} parent=1 // pred_region
      _
    $region9: #{gv_graph_transformer_block.5} parent=1 // pred_fallthru
      _
    // Predicated region
    $region10: #{gv_graph_transformer_block.5} parent=1 // pred_check
      _
    $region11: #{gv_graph_transformer_block.5} parent=1 // pred_check_branch
      %19 = sbr.rel (0) target = $region13
    $region12: #{gv_graph_transformer_block.5} parent=1 // pred_region
      _
    $region13: #{gv_graph_transformer_block.5} parent=1 // pred_fallthru
      _
    // Predicated region
    $region14: #{gv_graph_transformer_block.5} parent=1 // pred_check
      _
    $region15: #{gv_graph_transformer_block.5} parent=1 // pred_check_branch
      %21 = sbr.rel (0) target = $region17
    $region16: #{gv_graph_transformer_block.5} parent=1 // pred_region
      _
    $region17: #{gv_graph_transformer_block.5} parent=1 // pred_fallthru
      _
    // Predicated region
    $region18: #{gv_graph_transformer_block.5} parent=1 // pred_check
      _
    $region19: #{gv_graph_transformer_block.5} parent=1 // pred_check_branch
      %23 = sbr.rel (0) target = $region21
    $region20: #{gv_graph_transformer_block.5} parent=1 // pred_region
      _
    $region21: #{gv_graph_transformer_block.5} parent=1 // pred_fallthru
      _
    // Predicated region
    $region22: #{gv_graph_transformer_block.5} parent=1 // pred_check
      _
    $region23: #{gv_graph_transformer_block.5} parent=1 // pred_check_branch
      %25 = sbr.rel (0) target = $region25
    $region24: #{gv_graph_transformer_block.5} parent=1 // pred_region
      _
    $region25: #{gv_graph_transformer_block.5} parent=1 // pred_fallthru
      _
    %v26 = vld [vmem:[%s0] sm:$0xff]
    %v27 = vld [vmem:[%s0 + $0x8] sm:$0xff]
    %vm28 = vcmask 130048
    %v29 = vsel %vm28, %v26, 0.0
    %30 = vadd.xlane.f32.xlu0 %v29
    %v31 = vpop.xlane.xlu0 %30
    %v32 = vsel %vm28, %v27, 0.0
    %33 = vadd.xlane.f32.xlu0 %v32
    %v34 = vpop.xlane.xlu0 %33
    %v35 = vrcp.pop 16.0
    %v36 = vmul.f32 %v31, %v35
    %v37 = vmul.f32 %v34, %v35
    %v38 = vsub.f32 %v26, %v36
    %v39 = vsub.f32 %v27, %v37
    %v40 = vmul.f32 %v38, %v38
    %v41 = vmul.f32 %v39, %v39
    %v42 = vsel %vm28, %v40, 0.0
    %43 = vadd.xlane.f32.xlu0 %v42
    %v44 = vpop.xlane.xlu0 %43
    %v45 = vsel %vm28, %v41, 0.0
    %46 = vadd.xlane.f32.xlu0 %v45
    %v47 = vpop.xlane.xlu0 %46
    %v48 = vmul.f32 %v44, %v35
    %v49 = vmul.f32 %v47, %v35
    %v50 = vadd.f32 %v48, 1e-05
    %v51 = vadd.f32 %v49, 1e-05
    %v52 = vrsqrt.pop %v50
    %v53 = vrsqrt.pop %v51
    %v54 = vmul.f32 %v38, %v52
    %v55 = vmul.f32 %v39, %v53
    %v56 = vld [vmem:[%s2] sm:$0x1]
    %v58 = vlaneseq
    %v59 = vshrl.u32 %v58, 7
    %v60 = vsub.s32 0, %v59
    %v61 = vrot.slane %v56, %v60
    %v63 = vmul.f32 %v54, %v61
    %v64 = vmul.f32 %v55, %v61
    %v65 = vld [vmem:[%s3] sm:$0x1]
    %v67 = vlaneseq
    %v68 = vshrl.u32 %v67, 7
    %v69 = vsub.s32 0, %v68
    %v70 = vrot.slane %v65, %v69
    %v72 = vadd.f32 %v63, %v70
    %v73 = vadd.f32 %v64, %v70
    %74 = vst.msk [vmem:[#allocation2] sm:$0xff] %vm28, %v72
    %75 = vst.msk [vmem:[#allocation2 + $0x8] sm:$0xff] %vm28, %v73
    %v76 = vld [vmem:[%s1] sm:$0xff]
    %v77 = vld [vmem:[%s1 + $0x8] sm:$0xff]
    %vm78 = vcmp.ne.f32.partialorder %v76, 0.0
    %vm79 = vcmp.ne.f32.partialorder %v77, 0.0
    %v80 = vsel %vm78, 1, 0
    %v81 = vsel %vm79, 1, 0
    %v82 = vcvt.s32.f32 %v80
    %v83 = vcvt.s32.f32 %v81
    %v84 = vmul.f32 %v76, %v76
    %v85 = vmul.f32 %v77, %v77
    %vm86 = vcmask 195584
    %v87 = vsel %vm86, %v84, 0.0
    %88 = vadd.xlane.f32.xlu0 %v87
    %v89 = vpop.xlane.xlu0 %88
    %v90 = vsel %vm86, %v85, 0.0
    %91 = vadd.xlane.f32.xlu0 %v90
    %v92 = vpop.xlane.xlu0 %91
    %v93 = vadd.f32 %v89, 1e-08
    %v94 = vadd.f32 %v92, 1e-08
    %v95 = vrcp.pop 8.0
    %v96 = vmul.f32 %v93, %v95
    %v97 = vmul.f32 %v94, %v95
    %v98 = vrsqrt.pop %v96
    %v99 = vrsqrt.pop %v97
    %v100 = vmul.f32 %v76, %v98
    %v101 = vmul.f32 %v77, %v99
    %v102 = vmul.f32 %v100, %v82
    %v103 = vmul.f32 %v101, %v83
    %v104 = vld [vmem:[%s4] sm:$0x1]
    %v106 = vlaneseq
    %v107 = vshrl.u32 %v106, 7
    %v108 = vsub.s32 0, %v107
    %v109 = vrot.slane %v104, %v108
    %v111 = vmul.f32 %v102, %v109
    %v112 = vmul.f32 %v103, %v109
    %v113 = vld [vmem:[%s5] sm:$0x1]
    %v115 = vlaneseq
    %v116 = vshrl.u32 %v115, 7
    %v117 = vsub.s32 0, %v116
    %v118 = vrot.slane %v113, %v117
    %v120 = vadd.f32 %v111, %v118
    %v121 = vadd.f32 %v112, %v118
    %122 = vst.msk [vmem:[%s7] sm:$0xff] %vm86, %v120
    %123 = vst.msk [vmem:[%s7 + $0x8] sm:$0xff] %vm86, %v121
    // Predicated region
    $region26: #{gv_graph_transformer_block.5} parent=1 // pred_check
      _
    $region27: #{gv_graph_transformer_block.5} parent=1 // pred_check_branch
      %125 = sbr.rel (0) target = $region29
    $region28: #{gv_graph_transformer_block.5} parent=1 // pred_region
      %s127 = ssub.s32 256, 256
      %128 = vsyncadd [#allocation3], %s127
      %s129 = sshll.u32 [#allocation2], 4
      %s130 = int_to_ptr.vmem [resolvable:$true] %s129
      %135 = dma.vmem_to_hbm [thread:$0]  %s130, 256, %s6, [#allocation3], 128, 128, 8
    $region29: #{gv_graph_transformer_block.5} parent=1 // pred_fallthru
      _
    // Predicated region
    $region30: #{gv_graph_transformer_block.5} parent=1 // pred_check
      _
    $region31: #{gv_graph_transformer_block.5} parent=1 // pred_check_branch
      %137 = sbr.rel (0) target = $region33
    $region32: #{gv_graph_transformer_block.5} parent=1 // pred_region
      _
    $region33: #{gv_graph_transformer_block.5} parent=1 // pred_fallthru
      _
    // Predicated region
    $region34: #{gv_graph_transformer_block.5} parent=1 // pred_check
      _
    $region35: #{gv_graph_transformer_block.5} parent=1 // pred_check_branch
      %139 = sbr.rel (0) target = $region37
    $region36: #{gv_graph_transformer_block.5} parent=1 // pred_region
      %140 = dma.done [#allocation3], 256
    $region37: #{gv_graph_transformer_block.5} parent=1 // pred_fallthru
      _
    // Predicated region
    $region38: #{gv_graph_transformer_block.5} parent=1 // pred_check
      _
    $region39: #{gv_graph_transformer_block.5} parent=1 // pred_check_branch
      %142 = sbr.rel (0) target = $region41
    $region40: #{gv_graph_transformer_block.5} parent=1 // pred_region
      _
    $region41: #{gv_graph_transformer_block.5} parent=1 // pred_fallthru
      _
    %143 = vsyncpa [#allocation3], 1

</llo_original>
